<compile_context>
chip_gen: v6e
topology: v6e:2x2x1
jax: 0.10.0
libtpu: 0.0.40
codegen_flags: <defaults>
</compile_context>

<pallas_src>
import functools
import math

import jax
import jax.numpy as jnp
from jax.experimental import pallas as pl
from jax.experimental.pallas import tpu as pltpu


def _round_up(v, m):
    return (v + m - 1) // m * m


def _gru_cell_kernel(x_ref, w_ih_ref, w_hh_ref, b_ih_ref, b_hh_ref,
                     y_ref, h_ref, *, hp):
    """One GRU time step for one batch row-tile.

    x_ref:    (1, tb, Ip)   bf16  input slab at time t (time-major)
    w_ih_ref: (Ip, 3*Hp)    bf16  gate-major packed input weights   [r | z | n]
    w_hh_ref: (Hp, 3*Hp)    bf16  gate-major packed recurrent weights
    b_ih_ref: (1, 3*Hp)     f32   packed input bias
    b_hh_ref: (1, 3*Hp)     f32   packed recurrent bias
    y_ref:    (1, tb, Hp)   f32   output h_t slab (written every step)
    h_ref:    (tb, Hp)      f32   hidden carry (resident across the t axis)
    """
    t = pl.program_id(1)

    @pl.when(t == 0)
    def _init():
        h_ref[...] = jnp.zeros_like(h_ref)

    h_prev = h_ref[...]                        # f32 carry
    x_t = x_ref[0]                             # (tb, Ip)

    # Fused 3-gate matmuls: one wide MXU pass each, f32 accumulation,
    # single bias broadcast.
    gi = jnp.dot(x_t, w_ih_ref[...], preferred_element_type=jnp.float32)
    gi = gi + b_ih_ref[...]
    gh = jnp.dot(h_prev.astype(w_hh_ref.dtype), w_hh_ref[...],
                 preferred_element_type=jnp.float32)
    gh = gh + b_hh_ref[...]

    # PyTorch gate order: r, z, n — each a 128-aligned lane slice.
    r = jax.nn.sigmoid(gi[:, 0 * hp:1 * hp] + gh[:, 0 * hp:1 * hp])
    z = jax.nn.sigmoid(gi[:, 1 * hp:2 * hp] + gh[:, 1 * hp:2 * hp])
    n = jnp.tanh(gi[:, 2 * hp:3 * hp] + r * gh[:, 2 * hp:3 * hp])

    h_new = (1.0 - z) * n + z * h_prev          # f32 epilogue (VPU)
    h_ref[...] = h_new
    y_ref[0] = h_new.astype(y_ref.dtype)


def _pack_gate_major_weight(w, h, hp, in_dim, in_pad):
    """PyTorch (3H, in) [r; z; n] rows -> (in_pad, 3*hp) columns [r | z | n]."""
    parts = []
    for g in range(3):
        wg = w[g * h:(g + 1) * h, :].T                       # (in, h)
        wg = jnp.pad(wg, ((0, in_pad - in_dim), (0, hp - h)))
        parts.append(wg)
    return jnp.concatenate(parts, axis=1)


def _pack_gate_major_bias(b, h, hp):
    parts = [jnp.pad(b[g * h:(g + 1) * h], (0, hp - h)) for g in range(3)]
    return jnp.concatenate(parts)[None, :].astype(jnp.float32)   # (1, 3*hp)


class EncoderRNNPallas:
    """Pallas TPU implementation of EncoderRNN.forward (1-layer GRU, batch_first)."""

    def __init__(self, input_size, hidden_size, w_ih, w_hh, b_ih, b_hh, *,
                 mxu_dtype=jnp.bfloat16, batch_tile=256):
        self.input_size = input_size
        self.hidden_size = hidden_size
        self.mxu_dtype = mxu_dtype
        self.batch_tile = batch_tile
        # Lane-dense, 128-aligned per-gate segments; repacked ONCE here
        # (hoisted out of the per-call path).
        self.ip = _round_up(input_size, 128)
        self.hp = _round_up(hidden_size, 128)
        self.w_ih_p = _pack_gate_major_weight(
            w_ih, hidden_size, self.hp, input_size, self.ip).astype(mxu_dtype)
        self.w_hh_p = _pack_gate_major_weight(
            w_hh, hidden_size, self.hp, hidden_size, self.hp).astype(mxu_dtype)
        self.b_ih_p = _pack_gate_major_bias(b_ih, hidden_size, self.hp)
        self.b_hh_p = _pack_gate_major_bias(b_hh, hidden_size, self.hp)

    def _make_call(self, seq_len, bp, tb, *, single_buffer_weights):
        ip, hp = self.ip, self.hp
        n3 = 3 * hp
        grid_b = bp // tb
        grid = (grid_b, seq_len)

        def const_spec(shape):
            kwargs = {}
            if single_buffer_weights:
                # Constant index_map -> double buffering only wastes VMEM.
                kwargs["pipeline_mode"] = pl.Buffered(1)
            return pl.BlockSpec(shape, lambda b, t: (0, 0), **kwargs)

        mxu_bytes = jnp.dtype(self.mxu_dtype).itemsize
        cost = pl.CostEstimate(
            flops=int(grid_b * seq_len
                      * (2 * tb * ip * n3 + 2 * tb * hp * n3 + 12 * tb * hp)),
            transcendentals=int(grid_b * seq_len * 3 * tb * hp),
            bytes_accessed=int(seq_len * bp * ip * mxu_bytes        # x
                               + (ip + hp) * n3 * mxu_bytes         # weights
                               + 2 * n3 * 4                         # biases
                               + seq_len * bp * hp * 4              # output
                               + bp * hp * 4),                      # hidden
        )

        return pl.pallas_call(
            functools.partial(_gru_cell_kernel, hp=hp),
            out_shape=(
                jax.ShapeDtypeStruct((seq_len, bp, hp), jnp.float32),   # y (time-major)
                jax.ShapeDtypeStruct((bp, hp), jnp.float32),            # h_n
            ),
            grid_spec=pltpu.PrefetchScalarGridSpec(
                num_scalar_prefetch=0,
                grid=grid,
                in_specs=[
                    pl.BlockSpec((1, tb, ip), lambda b, t: (t, b, 0)),  # x_t
                    const_spec((ip, n3)),                               # W_ih packed
                    const_spec((hp, n3)),                               # W_hh packed
                    const_spec((1, n3)),                                # b_ih packed
                    const_spec((1, n3)),                                # b_hh packed
                ],
                out_specs=[
                    pl.BlockSpec((1, tb, hp), lambda b, t: (t, b, 0)),  # y_t
                    pl.BlockSpec((tb, hp), lambda b, t: (b, 0)),        # h carry
                ],
            ),
            compiler_params=pltpu.CompilerParams(
                dimension_semantics=("parallel", "arbitrary")),
            cost_estimate=cost,
        )

    def __call__(self, x):
        B, S, I = x.shape
        assert I == self.input_size
        # Batch-row tiling: multiple of 8 sublanes, cdiv-style padding
        # (no divisibility assert, no "one giant block" VMEM blowup).
        tb = min(self.batch_tile, _round_up(B, 8))
        bp = _round_up(B, tb)

        x_tm = jnp.transpose(x, (1, 0, 2))                    # (S, B, I) time-major
        x_tm = jnp.pad(x_tm, ((0, 0), (0, bp - B), (0, self.ip - I)))
        x_tm = x_tm.astype(self.mxu_dtype)

        args = (x_tm, self.w_ih_p, self.w_hh_p, self.b_ih_p, self.b_hh_p)
        try:
            y_pad, h_pad = self._make_call(
                S, bp, tb, single_buffer_weights=True)(*args)
        except Exception:
            # pipeline_mode=pl.Buffered(1) unsupported here -> default buffering.
            y_pad, h_pad = self._make_call(
                S, bp, tb, single_buffer_weights=False)(*args)

        H = self.hidden_size
        output = jnp.transpose(y_pad, (1, 0, 2))[:B, :, :H]   # (B, S, H)
        hidden = h_pad[:B, :H][None, :, :]                    # (1, B, H) like PyTorch
        return output, hidden


def gru_reference(x, w_ih, w_hh, b_ih, b_hh, hidden_size, *, mxu_dtype=None):
    """Pure-JAX 1-layer GRU (batch_first, h0 = 0) matching PyTorch nn.GRU."""
    H = hidden_size
    w_ih_t = w_ih.T
    w_hh_t = w_hh.T
    if mxu_dtype is not None:
        x = x.astype(mxu_dtype)
        w_ih_t = w_ih_t.astype(mxu_dtype)
        w_hh_t = w_hh_t.astype(mxu_dtype)

    def step(h, x_t):
        gi = jnp.dot(x_t, w_ih_t, preferred_element_type=jnp.float32) + b_ih
        gh = jnp.dot(h.astype(w_hh_t.dtype), w_hh_t,
                     preferred_element_type=jnp.float32) + b_hh
        r = jax.nn.sigmoid(gi[:, :H] + gh[:, :H])
        z = jax.nn.sigmoid(gi[:, H:2 * H] + gh[:, H:2 * H])
        n = jnp.tanh(gi[:, 2 * H:] + r * gh[:, 2 * H:])
        h_new = (1.0 - z) * n + z * h
        return h_new, h_new

    B = x.shape[0]
    h0 = jnp.zeros((B, H), jnp.float32)
    h_last, ys = jax.lax.scan(step, h0, jnp.transpose(x, (1, 0, 2)))
    return jnp.transpose(ys, (1, 0, 2)), h_last[None, :, :]


if __name__ == "__main__":
    input_size, hidden_size = 32, 32
    batch, seq = 2, 8

    key = jax.random.PRNGKey(0)
    kx, k1, k2, k3, k4 = jax.random.split(key, 5)

    # PyTorch nn.GRU-style uniform(-1/sqrt(H), 1/sqrt(H)) init.
    bound = 1.0 / math.sqrt(hidden_size)
    w_ih = jax.random.uniform(k1, (3 * hidden_size, input_size), jnp.float32, -bound, bound)
    w_hh = jax.random.uniform(k2, (3 * hidden_size, hidden_size), jnp.float32, -bound, bound)
    b_ih = jax.random.uniform(k3, (3 * hidden_size,), jnp.float32, -bound, bound)
    b_hh = jax.random.uniform(k4, (3 * hidden_size,), jnp.float32, -bound, bound)

    x = jax.random.normal(kx, (batch, seq, input_size), jnp.float32)

    encoder = EncoderRNNPallas(input_size, hidden_size, w_ih, w_hh, b_ih, b_hh)
    output, hidden = encoder(x)
    output, hidden = jax.block_until_ready((output, hidden))

    assert output.shape == (batch, seq, hidden_size)
    assert hidden.shape == (1, batch, hidden_size)

    # Tight check vs a reference doing the same bf16-operand / f32-accumulate math.
    y_bf, h_bf = gru_reference(x, w_ih, w_hh, b_ih, b_hh, hidden_size,
                               mxu_dtype=jnp.bfloat16)
    assert jnp.allclose(output, y_bf, atol=5e-3, rtol=0), "mismatch vs bf16-matched reference"
    assert jnp.allclose(hidden, h_bf, atol=5e-3, rtol=0), "mismatch vs bf16-matched reference"

    # Looser check vs the full-f32 reference (kernel uses bf16 MXU operands).
    y_f32, h_f32 = gru_reference(x, w_ih, w_hh, b_ih, b_hh, hidden_size)
    assert jnp.allclose(output, y_f32, atol=5e-2, rtol=0), "mismatch vs f32 reference"
    assert jnp.allclose(hidden, h_f32, atol=5e-2, rtol=0), "mismatch vs f32 reference"

    print("KERNEL_OK")
</pallas_src>

<mosaic_0001>
module attributes {stable_mosaic.version = 11 : i64} {
  func.func @_gru_cell_kernel(%arg0: i32, %arg1: i32, %arg2: memref<1x8x128xbf16, #tpu.memory_space<vmem>>, %arg3: memref<128x384xbf16, #tpu.memory_space<vmem>>, %arg4: memref<128x384xbf16, #tpu.memory_space<vmem>>, %arg5: memref<1x384xf32, #tpu.memory_space<vmem>>, %arg6: memref<1x384xf32, #tpu.memory_space<vmem>>, %arg7: memref<1x8x128xf32, #tpu.memory_space<vmem>>, %arg8: memref<8x128xf32, #tpu.memory_space<vmem>>) attributes {dimension_semantics = [#tpu.dimension_semantics<parallel>, #tpu.dimension_semantics<arbitrary>], iteration_bounds = array<i64: 1, 8>, scalar_prefetch = 0 : i64, scratch_operands = 0 : i64, tpu.core_type = #tpu.core_type<tc>, window_params = [{transform_indices = @transform_0, window_bounds = array<i64: 1, 8, 128>}, {pipeline_mode = #tpu.pipeline_mode<synchronous>, transform_indices = @transform_1, window_bounds = array<i64: 128, 384>}, {pipeline_mode = #tpu.pipeline_mode<synchronous>, transform_indices = @transform_2, window_bounds = array<i64: 128, 384>}, {pipeline_mode = #tpu.pipeline_mode<synchronous>, transform_indices = @transform_3, window_bounds = array<i64: 1, 384>}, {pipeline_mode = #tpu.pipeline_mode<synchronous>, transform_indices = @transform_4, window_bounds = array<i64: 1, 384>}, {transform_indices = @transform_5, window_bounds = array<i64: 1, 8, 128>}, {transform_indices = @transform_6, window_bounds = array<i64: 8, 128>}]} {
    %c0_i32 = arith.constant 0 : i32
    %0 = arith.cmpi eq, %arg1, %c0_i32 : i32
    %1 = arith.extui %0 : i1 to i32
    %c0_i32_0 = arith.constant 0 : i32
    %2 = arith.cmpi ne, %1, %c0_i32_0 : i32
    scf.if %2 {
      %cst_22 = arith.constant 0.000000e+00 : f32
      %47 = vector.broadcast %cst_22 : f32 to vector<8x128xf32>
      %c0_23 = arith.constant 0 : index
      %c0_24 = arith.constant 0 : index
      %48 = vector.load %arg8[%c0_23, %c0_24] : memref<8x128xf32, #tpu.memory_space<vmem>>, vector<8x128xf32>
      tpu.vector_store %arg8[%c0_23, %c0_24], %47 {strides = array<i32>} : memref<8x128xf32, #tpu.memory_space<vmem>>, vector<8x128xf32>,
    } else {
    }
    %c0 = arith.constant 0 : index
    %c0_1 = arith.constant 0 : index
    %3 = vector.load %arg8[%c0, %c0_1] : memref<8x128xf32, #tpu.memory_space<vmem>>, vector<8x128xf32>
    %c0_2 = arith.constant 0 : index
    %c0_3 = arith.constant 0 : index
    %c0_4 = arith.constant 0 : index
    %4 = vector.load %arg2[%c0_2, %c0_3, %c0_4] : memref<1x8x128xbf16, #tpu.memory_space<vmem>>, vector<1x8x128xbf16>
    %5 = vector.shape_cast %4 : vector<1x8x128xbf16> to vector<8x128xbf16>
    %c0_5 = arith.constant 0 : index
    %c0_6 = arith.constant 0 : index
    %6 = vector.load %arg3[%c0_5, %c0_6] : memref<128x384xbf16, #tpu.memory_space<vmem>>, vector<128x384xbf16>
    %cst = arith.constant dense<0.000000e+00> : vector<8x384xf32>
    %7 = tpu.matmul %5, %6, %cst {dimension_numbers = #tpu.dot_dimension_numbers<[1], [0], [0], [1], [0, 0, 1, 1], [], []>} : vector<8x128xbf16>, vector<128x384xbf16>, vector<8x384xf32> -> vector<8x384xf32>
    %c0_7 = arith.constant 0 : index
    %c0_8 = arith.constant 0 : index
    %8 = vector.load %arg5[%c0_7, %c0_8] : memref<1x384xf32, #tpu.memory_space<vmem>>, vector<1x384xf32>
    %9 = vector.broadcast %8 : vector<1x384xf32> to vector<8x384xf32>
    %10 = arith.addf %7, %9 : vector<8x384xf32>
    %11 = arith.truncf %3 : vector<8x128xf32> to vector<8x128xbf16>
    %c0_9 = arith.constant 0 : index
    %c0_10 = arith.constant 0 : index
    %12 = vector.load %arg4[%c0_9, %c0_10] : memref<128x384xbf16, #tpu.memory_space<vmem>>, vector<128x384xbf16>
    %cst_11 = arith.constant dense<0.000000e+00> : vector<8x384xf32>
    %13 = tpu.matmul %11, %12, %cst_11 {dimension_numbers = #tpu.dot_dimension_numbers<[1], [0], [0], [1], [0, 0, 1, 1], [], []>} : vector<8x128xbf16>, vector<128x384xbf16>, vector<8x384xf32> -> vector<8x384xf32>
    %c0_12 = arith.constant 0 : index
    %c0_13 = arith.constant 0 : index
    %14 = vector.load %arg6[%c0_12, %c0_13] : memref<1x384xf32, #tpu.memory_space<vmem>>, vector<1x384xf32>
    %15 = vector.broadcast %14 : vector<1x384xf32> to vector<8x384xf32>
    %16 = arith.addf %13, %15 : vector<8x384xf32>
    %17 = vector.extract_strided_slice %10 {offsets = [0, 0], sizes = [8, 128], strides = [1, 1]} : vector<8x384xf32> to vector<8x128xf32>
    %18 = vector.extract_strided_slice %16 {offsets = [0, 0], sizes = [8, 128], strides = [1, 1]} : vector<8x384xf32> to vector<8x128xf32>
    %19 = arith.addf %17, %18 : vector<8x128xf32>
    %20 = arith.negf %19 : vector<8x128xf32>
    %21 = math.exp %20 : vector<8x128xf32>
    %cst_14 = arith.constant 1.000000e+00 : f32
    %22 = vector.broadcast %cst_14 : f32 to vector<8x128xf32>
    %23 = arith.addf %22, %21 : vector<8x128xf32>
    %24 = arith.divf %22, %23 : vector<8x128xf32>
    %25 = vector.extract_strided_slice %10 {offsets = [0, 128], sizes = [8, 128], strides = [1, 1]} : vector<8x384xf32> to vector<8x128xf32>
    %26 = vector.extract_strided_slice %16 {offsets = [0, 128], sizes = [8, 128], strides = [1, 1]} : vector<8x384xf32> to vector<8x128xf32>
    %27 = arith.addf %25, %26 : vector<8x128xf32>
    %28 = arith.negf %27 : vector<8x128xf32>
    %29 = math.exp %28 : vector<8x128xf32>
    %cst_15 = arith.constant 1.000000e+00 : f32
    %30 = vector.broadcast %cst_15 : f32 to vector<8x128xf32>
    %31 = arith.addf %30, %29 : vector<8x128xf32>
    %32 = arith.divf %30, %31 : vector<8x128xf32>
    %33 = vector.extract_strided_slice %10 {offsets = [0, 256], sizes = [8, 128], strides = [1, 1]} : vector<8x384xf32> to vector<8x128xf32>
    %34 = vector.extract_strided_slice %16 {offsets = [0, 256], sizes = [8, 128], strides = [1, 1]} : vector<8x384xf32> to vector<8x128xf32>
    %35 = arith.mulf %24, %34 : vector<8x128xf32>
    %36 = arith.addf %33, %35 : vector<8x128xf32>
    %37 = math.tanh %36 : vector<8x128xf32>
    %cst_16 = arith.constant 1.000000e+00 : f32
    %38 = vector.broadcast %cst_16 : f32 to vector<8x128xf32>
    %39 = arith.subf %38, %32 : vector<8x128xf32>
    %40 = arith.mulf %39, %37 : vector<8x128xf32>
    %41 = arith.mulf %32, %3 : vector<8x128xf32>
    %42 = arith.addf %40, %41 : vector<8x128xf32>
    %c0_17 = arith.constant 0 : index
    %c0_18 = arith.constant 0 : index
    %43 = vector.load %arg8[%c0_17, %c0_18] : memref<8x128xf32, #tpu.memory_space<vmem>>, vector<8x128xf32>
    tpu.vector_store %arg8[%c0_17, %c0_18], %42 {strides = array<i32>} : memref<8x128xf32, #tpu.memory_space<vmem>>, vector<8x128xf32>,
    %c0_19 = arith.constant 0 : index
    %c0_20 = arith.constant 0 : index
    %c0_21 = arith.constant 0 : index
    %44 = vector.load %arg7[%c0_19, %c0_20, %c0_21] : memref<1x8x128xf32, #tpu.memory_space<vmem>>, vector<1x8x128xf32>
    %45 = vector.shape_cast %44 : vector<1x8x128xf32> to vector<8x128xf32>
    %46 = vector.shape_cast %42 : vector<8x128xf32> to vector<1x8x128xf32>
    tpu.vector_store %arg7[%c0_19, %c0_20, %c0_21], %46 {strides = array<i32>} : memref<1x8x128xf32, #tpu.memory_space<vmem>>, vector<1x8x128xf32>,
    return
  }
  func.func @transform_0(%arg0: i32, %arg1: i32) -> (i32, i32, i32) {
    %c0_i32 = arith.constant 0 : i32
    %c0_i32_0 = arith.constant 0 : i32
    return %arg1, %arg0, %c0_i32 : i32, i32, i32
  }
  func.func @transform_1(%arg0: i32, %arg1: i32) -> (i32, i32) {
    %c0_i32 = arith.constant 0 : i32
    %c0_i32_0 = arith.constant 0 : i32
    %c0_i32_1 = arith.constant 0 : i32
    return %c0_i32, %c0_i32_0 : i32, i32
  }
  func.func @transform_2(%arg0: i32, %arg1: i32) -> (i32, i32) {
    %c0_i32 = arith.constant 0 : i32
    %c0_i32_0 = arith.constant 0 : i32
    %c0_i32_1 = arith.constant 0 : i32
    return %c0_i32, %c0_i32_0 : i32, i32
  }
  func.func @transform_3(%arg0: i32, %arg1: i32) -> (i32, i32) {
    %c0_i32 = arith.constant 0 : i32
    %c0_i32_0 = arith.constant 0 : i32
    %c0_i32_1 = arith.constant 0 : i32
    return %c0_i32, %c0_i32_0 : i32, i32
  }
  func.func @transform_4(%arg0: i32, %arg1: i32) -> (i32, i32) {
    %c0_i32 = arith.constant 0 : i32
    %c0_i32_0 = arith.constant 0 : i32
    %c0_i32_1 = arith.constant 0 : i32
    return %c0_i32, %c0_i32_0 : i32, i32
  }
  func.func @transform_5(%arg0: i32, %arg1: i32) -> (i32, i32, i32) {
    %c0_i32 = arith.constant 0 : i32
    %c0_i32_0 = arith.constant 0 : i32
    return %arg1, %arg0, %c0_i32 : i32, i32, i32
  }
  func.func @transform_6(%arg0: i32, %arg1: i32) -> (i32, i32) {
    %c0_i32 = arith.constant 0 : i32
    %c0_i32_0 = arith.constant 0 : i32
    return %arg0, %c0_i32 : i32, i32
  }
}

module attributes {stable_mosaic.version = 11 : i64} {
  func.func @_gru_cell_kernel(%arg0: i32, %arg1: i32, %arg2: memref<1x8x128xbf16, #tpu.memory_space<vmem>>, %arg3: memref<128x384xbf16, #tpu.memory_space<vmem>>, %arg4: memref<128x384xbf16, #tpu.memory_space<vmem>>, %arg5: memref<1x384xf32, #tpu.memory_space<vmem>>, %arg6: memref<1x384xf32, #tpu.memory_space<vmem>>, %arg7: memref<1x8x128xf32, #tpu.memory_space<vmem>>, %arg8: memref<8x128xf32, #tpu.memory_space<vmem>>) attributes {dimension_semantics = [#tpu.dimension_semantics<parallel>, #tpu.dimension_semantics<arbitrary>], iteration_bounds = array<i64: 1, 8>, scalar_prefetch = 0 : i64, scratch_operands = 0 : i64, tpu.core_type = #tpu.core_type<tc>, window_params = [{transform_indices = @transform_0, window_bounds = array<i64: 1, 8, 128>}, {pipeline_mode = #tpu.pipeline_mode<synchronous>, transform_indices = @transform_1, window_bounds = array<i64: 128, 384>}, {pipeline_mode = #tpu.pipeline_mode<synchronous>, transform_indices = @transform_2, window_bounds = array<i64: 128, 384>}, {pipeline_mode = #tpu.pipeline_mode<synchronous>, transform_indices = @transform_3, window_bounds = array<i64: 1, 384>}, {pipeline_mode = #tpu.pipeline_mode<synchronous>, transform_indices = @transform_4, window_bounds = array<i64: 1, 384>}, {transform_indices = @transform_5, window_bounds = array<i64: 1, 8, 128>}, {transform_indices = @transform_6, window_bounds = array<i64: 8, 128>}]} {
    %c0_i32 = arith.constant 0 : i32
    %0 = arith.cmpi eq, %arg1, %c0_i32 : i32
    %1 = arith.extui %0 : i1 to i32
    %c0_i32_0 = arith.constant 0 : i32
    %2 = arith.cmpi ne, %1, %c0_i32_0 : i32
    scf.if %2 {
      %cst_22 = arith.constant 0.000000e+00 : f32
      %47 = vector.broadcast %cst_22 : f32 to vector<8x128xf32>
      %c0_23 = arith.constant 0 : index
      %c0_24 = arith.constant 0 : index
      %48 = vector.load %arg8[%c0_23, %c0_24] : memref<8x128xf32, #tpu.memory_space<vmem>>, vector<8x128xf32>
      tpu.vector_store %arg8[%c0_23, %c0_24], %47 {strides = array<i32>} : memref<8x128xf32, #tpu.memory_space<vmem>>, vector<8x128xf32>,
    } else {
    }
    %c0 = arith.constant 0 : index
    %c0_1 = arith.constant 0 : index
    %3 = vector.load %arg8[%c0, %c0_1] : memref<8x128xf32, #tpu.memory_space<vmem>>, vector<8x128xf32>
    %c0_2 = arith.constant 0 : index
    %c0_3 = arith.constant 0 : index
    %c0_4 = arith.constant 0 : index
    %4 = vector.load %arg2[%c0_2, %c0_3, %c0_4] : memref<1x8x128xbf16, #tpu.memory_space<vmem>>, vector<1x8x128xbf16>
    %5 = vector.shape_cast %4 : vector<1x8x128xbf16> to vector<8x128xbf16>
    %c0_5 = arith.constant 0 : index
    %c0_6 = arith.constant 0 : index
    %6 = vector.load %arg3[%c0_5, %c0_6] : memref<128x384xbf16, #tpu.memory_space<vmem>>, vector<128x384xbf16>
    %cst = arith.constant dense<0.000000e+00> : vector<8x384xf32>
    %7 = tpu.matmul %5, %6, %cst {dimension_numbers = #tpu.dot_dimension_numbers<[1], [0], [0], [1], [0, 0, 1, 1], [], []>} : vector<8x128xbf16>, vector<128x384xbf16>, vector<8x384xf32> -> vector<8x384xf32>
    %c0_7 = arith.constant 0 : index
    %c0_8 = arith.constant 0 : index
    %8 = vector.load %arg5[%c0_7, %c0_8] : memref<1x384xf32, #tpu.memory_space<vmem>>, vector<1x384xf32>
    %9 = vector.broadcast %8 : vector<1x384xf32> to vector<8x384xf32>
    %10 = arith.addf %7, %9 : vector<8x384xf32>
    %11 = arith.truncf %3 : vector<8x128xf32> to vector<8x128xbf16>
    %c0_9 = arith.constant 0 : index
    %c0_10 = arith.constant 0 : index
    %12 = vector.load %arg4[%c0_9, %c0_10] : memref<128x384xbf16, #tpu.memory_space<vmem>>, vector<128x384xbf16>
    %cst_11 = arith.constant dense<0.000000e+00> : vector<8x384xf32>
    %13 = tpu.matmul %11, %12, %cst_11 {dimension_numbers = #tpu.dot_dimension_numbers<[1], [0], [0], [1], [0, 0, 1, 1], [], []>} : vector<8x128xbf16>, vector<128x384xbf16>, vector<8x384xf32> -> vector<8x384xf32>
    %c0_12 = arith.constant 0 : index
    %c0_13 = arith.constant 0 : index
    %14 = vector.load %arg6[%c0_12, %c0_13] : memref<1x384xf32, #tpu.memory_space<vmem>>, vector<1x384xf32>
    %15 = vector.broadcast %14 : vector<1x384xf32> to vector<8x384xf32>
    %16 = arith.addf %13, %15 : vector<8x384xf32>
    %17 = vector.extract_strided_slice %10 {offsets = [0, 0], sizes = [8, 128], strides = [1, 1]} : vector<8x384xf32> to vector<8x128xf32>
    %18 = vector.extract_strided_slice %16 {offsets = [0, 0], sizes = [8, 128], strides = [1, 1]} : vector<8x384xf32> to vector<8x128xf32>
    %19 = arith.addf %17, %18 : vector<8x128xf32>
    %20 = arith.negf %19 : vector<8x128xf32>
    %21 = math.exp %20 : vector<8x128xf32>
    %cst_14 = arith.constant 1.000000e+00 : f32
    %22 = vector.broadcast %cst_14 : f32 to vector<8x128xf32>
    %23 = arith.addf %22, %21 : vector<8x128xf32>
    %24 = arith.divf %22, %23 : vector<8x128xf32>
    %25 = vector.extract_strided_slice %10 {offsets = [0, 128], sizes = [8, 128], strides = [1, 1]} : vector<8x384xf32> to vector<8x128xf32>
    %26 = vector.extract_strided_slice %16 {offsets = [0, 128], sizes = [8, 128], strides = [1, 1]} : vector<8x384xf32> to vector<8x128xf32>
    %27 = arith.addf %25, %26 : vector<8x128xf32>
    %28 = arith.negf %27 : vector<8x128xf32>
    %29 = math.exp %28 : vector<8x128xf32>
    %cst_15 = arith.constant 1.000000e+00 : f32
    %30 = vector.broadcast %cst_15 : f32 to vector<8x128xf32>
    %31 = arith.addf %30, %29 : vector<8x128xf32>
    %32 = arith.divf %30, %31 : vector<8x128xf32>
    %33 = vector.extract_strided_slice %10 {offsets = [0, 256], sizes = [8, 128], strides = [1, 1]} : vector<8x384xf32> to vector<8x128xf32>
    %34 = vector.extract_strided_slice %16 {offsets = [0, 256], sizes = [8, 128], strides = [1, 1]} : vector<8x384xf32> to vector<8x128xf32>
    %35 = arith.mulf %24, %34 : vector<8x128xf32>
    %36 = arith.addf %33, %35 : vector<8x128xf32>
    %37 = math.tanh %36 : vector<8x128xf32>
    %cst_16 = arith.constant 1.000000e+00 : f32
    %38 = vector.broadcast %cst_16 : f32 to vector<8x128xf32>
    %39 = arith.subf %38, %32 : vector<8x128xf32>
    %40 = arith.mulf %39, %37 : vector<8x128xf32>
    %41 = arith.mulf %32, %3 : vector<8x128xf32>
    %42 = arith.addf %40, %41 : vector<8x128xf32>
    %c0_17 = arith.constant 0 : index
    %c0_18 = arith.constant 0 : index
    %43 = vector.load %arg8[%c0_17, %c0_18] : memref<8x128xf32, #tpu.memory_space<vmem>>, vector<8x128xf32>
    tpu.vector_store %arg8[%c0_17, %c0_18], %42 {strides = array<i32>} : memref<8x128xf32, #tpu.memory_space<vmem>>, vector<8x128xf32>,
    %c0_19 = arith.constant 0 : index
    %c0_20 = arith.constant 0 : index
    %c0_21 = arith.constant 0 : index
    %44 = vector.load %arg7[%c0_19, %c0_20, %c0_21] : memref<1x8x128xf32, #tpu.memory_space<vmem>>, vector<1x8x128xf32>
    %45 = vector.shape_cast %44 : vector<1x8x128xf32> to vector<8x128xf32>
    %46 = vector.shape_cast %42 : vector<8x128xf32> to vector<1x8x128xf32>
    tpu.vector_store %arg7[%c0_19, %c0_20, %c0_21], %46 {strides = array<i32>} : memref<1x8x128xf32, #tpu.memory_space<vmem>>, vector<1x8x128xf32>,
    return
  }
  func.func @transform_0(%arg0: i32, %arg1: i32) -> (i32, i32, i32) {
    %c0_i32 = arith.constant 0 : i32
    %c0_i32_0 = arith.constant 0 : i32
    return %arg1, %arg0, %c0_i32 : i32, i32, i32
  }
  func.func @transform_1(%arg0: i32, %arg1: i32) -> (i32, i32) {
    %c0_i32 = arith.constant 0 : i32
    %c0_i32_0 = arith.constant 0 : i32
    %c0_i32_1 = arith.constant 0 : i32
    return %c0_i32, %c0_i32_0 : i32, i32
  }
  func.func @transform_2(%arg0: i32, %arg1: i32) -> (i32, i32) {
    %c0_i32 = arith.constant 0 : i32
    %c0_i32_0 = arith.constant 0 : i32
    %c0_i32_1 = arith.constant 0 : i32
    return %c0_i32, %c0_i32_0 : i32, i32
  }
  func.func @transform_3(%arg0: i32, %arg1: i32) -> (i32, i32) {
    %c0_i32 = arith.constant 0 : i32
    %c0_i32_0 = arith.constant 0 : i32
    %c0_i32_1 = arith.constant 0 : i32
    return %c0_i32, %c0_i32_0 : i32, i32
  }
  func.func @transform_4(%arg0: i32, %arg1: i32) -> (i32, i32) {
    %c0_i32 = arith.constant 0 : i32
    %c0_i32_0 = arith.constant 0 : i32
    %c0_i32_1 = arith.constant 0 : i32
    return %c0_i32, %c0_i32_0 : i32, i32
  }
  func.func @transform_5(%arg0: i32, %arg1: i32) -> (i32, i32, i32) {
    %c0_i32 = arith.constant 0 : i32
    %c0_i32_0 = arith.constant 0 : i32
    return %arg1, %arg0, %c0_i32 : i32, i32, i32
  }
  func.func @transform_6(%arg0: i32, %arg1: i32) -> (i32, i32) {
    %c0_i32 = arith.constant 0 : i32
    %c0_i32_0 = arith.constant 0 : i32
    return %arg0, %c0_i32 : i32, i32
  }
}

</mosaic_0001>

<llo_original>
// kernel: tpu_custom_call.1
$region0: #{tpu_custom_call.1}
  #allocation0 [shape = 'u32[]', space=smem, size = 0x4, offset = 0x4, fixed_abs, tag = 'smem constant byte address 0x4 - core index']
  #allocation1 [shape = 'u32[144,128]{1,0:T(1,128)}', space=vmem, size = 0x12000, scoped, tag = 'internal scratch']
  %s0 = inlined_call_operand.hbm [shape: bf16[8,8,128], index: 0, kind: input, shape index: {}]
  %s1 = inlined_call_operand.hbm [shape: bf16[128,384], index: 1, kind: input, shape index: {}]
  %s2 = inlined_call_operand.hbm [shape: bf16[128,384], index: 2, kind: input, shape index: {}]
  %s3 = inlined_call_operand.vmem [shape: f32[1,384], index: 3, kind: input, shape index: {}]
  %s4 = inlined_call_operand.vmem [shape: f32[1,384], index: 4, kind: input, shape index: {}]
  %s5 = inlined_call_operand.hbm [shape: f32[8,8,128], index: 5, kind: output, shape index: {0}]
  %s6 = inlined_call_operand.hbm [shape: f32[8,128], index: 6, kind: output, shape index: {1}]
  %7 = xla_tuple %s5, %s6
  %s8 = sld [smem:[#allocation0]]
  $region77: #{tpu_custom_call.1} parent=0
    _
  %s10 = ssub.s32 1, %s8
  %s11 = scalar_select 0, %s10, %s8
  $region1: #{tpu_custom_call.1} parent=0
    #allocation2 [shape = 'u8[4096]{0}', space=vmem, size = 0x1000, scoped, tag = 'input window, operand 0']
    #allocation3 [shape = 's32[2]{0}', space=sflag, size = 0x8, scoped, tag = 'scoped memory for tpu_custom_call.1']
    #allocation4 [shape = 's32[2]{0}', space=sflag, size = 0x8, scoped, tag = 'scoped memory for tpu_custom_call.1']
    #allocation5 [shape = 'u8[98304]{0}', space=vmem, size = 0x18000, scoped, tag = 'input window, operand 1, single buffered']
    #allocation6 [shape = 's32[1]{0}', space=sflag, size = 0x4, scoped, tag = 'scoped memory for tpu_custom_call.1']
    #allocation7 [shape = 'u8[98304]{0}', space=vmem, size = 0x18000, scoped, tag = 'input window, operand 2, single buffered']
    #allocation8 [shape = 'u8[8192]{0}', space=vmem, size = 0x2000, scoped, tag = 'output window, operand 0']
    #allocation9 [shape = 'u8[4096]{0}', space=vmem, size = 0x1000, scoped, tag = 'output window, operand 1, single buffered']
    #allocation10 [shape = 's32[1]{0}', space=sflag, size = 0x4, scoped, tag = 'scoped memory for tpu_custom_call.1']
    %12 = vsyncpa [#allocation3], 0
    %s13 = scalar_lea.sflag [#allocation3], 1
    %14 = vsyncpa %s13, 0
    %15 = vsyncpa [#allocation6], 0
    %16 = vsyncpa [#allocation4], 0
    %s17 = scalar_lea.sflag [#allocation4], 1
    %18 = vsyncpa %s17, 0
    %19 = vsyncpa [#allocation10], 0
    loop: start=0, step=1, limit=10
    $region2: #{tpu_custom_call.1} parent=1 // loop_pre_header
      _
    $region3: #{tpu_custom_call.1} parent=1 // loop_header
      %s21 = sphi 0, %s25
      %p22 = scmp.ge.s32.totalorder %s21, 10
      %s28 = sphi 0, %s40
      %s29 = sphi 0, %s36
      %s30 = sphi 0, %s28
      %s31 = sphi 0, %s29
      %s32 = sphi 0, %s30
      %s33 = sphi 0, %s31
      %s45 = sphi 0, %s47
      %s48 = sphi 0, %s45
      %s49 = sphi 0, %s48
      %s65 = sphi 0, %s49
      %s69 = sphi 0, %s69
      %s71 = sphi 0, %s69
      %s72 = sphi 0, %s71
      %s86 = sphi 0, %s72
      %s90 = sphi 0, %s90
      %s92 = sphi 0, %s90
      %s93 = sphi 0, %s92
      %s107 = sphi 0, %s93
      %s111 = sphi 0, %s111
      %s113 = sphi 0, %s111
      %s114 = sphi 0, %s113
      %s128 = sphi 0, %s114
      %s132 = sphi 0, %s132
      %s134 = sphi 0, %s132
      %s135 = sphi 0, %s134
      %s149 = sphi 0, %s135
      %s157 = sphi 0, %s159
      %s160 = sphi 0, %s157
      %s161 = sphi 0, %s160
      %s177 = sphi 0, %s161
      %s183 = sphi 0, %s185
      %s186 = sphi 0, %s183
      %s187 = sphi 0, %s186
      %s203 = sphi 0, %s187
    $region4: #{tpu_custom_call.1} parent=1 // loop_header_branch
      %24 = sbr.rel (%p22) target = $region8
    $region5: #{tpu_custom_call.1} parent=1 // loop_body
      %s26 = ssub.s32 %s21, 1
      %s27 = ssub.s32 %s21, 2
      %s34 = sadd.s32 1, %s29
      %p35 = scmp.ge.s32.totalorder %s34, 8
      %s36 = scalar_select %p35, 0, %s34
      %s37 = sadd.s32 1, %s28
      %s38 = scalar_select %p35, %s37, %s28
      %p39 = scmp.ge.s32.totalorder %s38, 1
      %s40 = scalar_select %p39, 0, %s38
      %s41 = ssub.s32 %s29, %s36
      %s42 = ssub.s32 %s28, %s40
      %s43 = sor.u32 %s41, %s42
      %p44 = scmp.eq.s32.totalorder %s43, 0
      %s46 = sadd.s32 %s45, 1
      %s47 = scalar_select %p44, %s45, %s46
      %p50 = pneg %p44
      %p51 = scmp.eq.s32.totalorder %s21, 7
      %p52 = por %p50, %p51
      %p53 = scmp.ne.s32.totalorder %s45, %s48
      %p54 = scmp.eq.s32.totalorder %s21, 0
      %p55 = por %p53, %p54
      %p56 = scmp.ne.s32.totalorder %s45, %s48
      %p57 = scmp.eq.s32.totalorder %s26, 7
      %p58 = por %p56, %p57
      %p59 = scmp.ne.s32.totalorder %s48, %s49
      %p60 = scmp.eq.s32.totalorder %s26, 0
      %p61 = por %p59, %p60
      %p62 = scmp.ne.s32.totalorder %s48, %s49
      %p63 = scmp.eq.s32.totalorder %s27, 7
      %p64 = por %p62, %p63
      %p66 = scmp.ne.s32.totalorder %s49, %s65
      %p67 = scmp.eq.s32.totalorder %s27, 0
      %p68 = por %p66, %p67
      %s70 = sadd.s32 %s69, 1
      %p73 = scmp.eq.s32.totalorder %s21, 7
      %p74 = scmp.ne.s32.totalorder %s69, %s71
      %p75 = scmp.eq.s32.totalorder %s21, 0
      %p76 = por %p74, %p75
      %p77 = scmp.ne.s32.totalorder %s69, %s71
      %p78 = scmp.eq.s32.totalorder %s26, 7
      %p79 = por %p77, %p78
      %p80 = scmp.ne.s32.totalorder %s71, %s72
      %p81 = scmp.eq.s32.totalorder %s26, 0
      %p82 = por %p80, %p81
      %p83 = scmp.ne.s32.totalorder %s71, %s72
      %p84 = scmp.eq.s32.totalorder %s27, 7
      %p85 = por %p83, %p84
      %p87 = scmp.ne.s32.totalorder %s72, %s86
      %p88 = scmp.eq.s32.totalorder %s27, 0
      %p89 = por %p87, %p88
      %s91 = sadd.s32 %s90, 1
      %p94 = scmp.eq.s32.totalorder %s21, 7
      %p95 = scmp.ne.s32.totalorder %s90, %s92
      %p96 = scmp.eq.s32.totalorder %s21, 0
      %p97 = por %p95, %p96
      %p98 = scmp.ne.s32.totalorder %s90, %s92
      %p99 = scmp.eq.s32.totalorder %s26, 7
      %p100 = por %p98, %p99
      %p101 = scmp.ne.s32.totalorder %s92, %s93
      %p102 = scmp.eq.s32.totalorder %s26, 0
      %p103 = por %p101, %p102
      %p104 = scmp.ne.s32.totalorder %s92, %s93
      %p105 = scmp.eq.s32.totalorder %s27, 7
      %p106 = por %p104, %p105
      %p108 = scmp.ne.s32.totalorder %s93, %s107
      %p109 = scmp.eq.s32.totalorder %s27, 0
      %p110 = por %p108, %p109
      %s112 = sadd.s32 %s111, 1
      %p115 = scmp.eq.s32.totalorder %s21, 7
      %p116 = scmp.ne.s32.totalorder %s111, %s113
      %p117 = scmp.eq.s32.totalorder %s21, 0
      %p118 = por %p116, %p117
      %p119 = scmp.ne.s32.totalorder %s111, %s113
      %p120 = scmp.eq.s32.totalorder %s26, 7
      %p121 = por %p119, %p120
      %p122 = scmp.ne.s32.totalorder %s113, %s114
      %p123 = scmp.eq.s32.totalorder %s26, 0
      %p124 = por %p122, %p123
      %p125 = scmp.ne.s32.totalorder %s113, %s114
      %p126 = scmp.eq.s32.totalorder %s27, 7
      %p127 = por %p125, %p126
      %p129 = scmp.ne.s32.totalorder %s114, %s128
      %p130 = scmp.eq.s32.totalorder %s27, 0
      %p131 = por %p129, %p130
      %s133 = sadd.s32 %s132, 1
      %p136 = scmp.eq.s32.totalorder %s21, 7
      %p137 = scmp.ne.s32.totalorder %s132, %s134
      %p138 = scmp.eq.s32.totalorder %s21, 0
      %p139 = por %p137, %p138
      %p140 = scmp.ne.s32.totalorder %s132, %s134
      %p141 = scmp.eq.s32.totalorder %s26, 7
      %p142 = por %p140, %p141
      %p143 = scmp.ne.s32.totalorder %s134, %s135
      %p144 = scmp.eq.s32.totalorder %s26, 0
      %p145 = por %p143, %p144
      %p146 = scmp.ne.s32.totalorder %s134, %s135
      %p147 = scmp.eq.s32.totalorder %s27, 7
      %p148 = por %p146, %p147
      %p150 = scmp.ne.s32.totalorder %s135, %s149
      %p151 = scmp.eq.s32.totalorder %s27, 0
      %p152 = por %p150, %p151
      %s153 = ssub.s32 %s29, %s36
      %s154 = ssub.s32 %s28, %s40
      %s155 = sor.u32 %s153, %s154
      %p156 = scmp.eq.s32.totalorder %s155, 0
      %s158 = sadd.s32 %s157, 1
      %s159 = scalar_select %p156, %s157, %s158
      %p162 = pneg %p156
      %p163 = scmp.eq.s32.totalorder %s21, 7
      %p164 = por %p162, %p163
      %p165 = scmp.ne.s32.totalorder %s157, %s160
      %p166 = scmp.eq.s32.totalorder %s21, 0
      %p167 = por %p165, %p166
      %p168 = scmp.ne.s32.totalorder %s157, %s160
      %p169 = scmp.eq.s32.totalorder %s26, 7
      %p170 = por %p168, %p169
      %p171 = scmp.ne.s32.totalorder %s160, %s161
      %p172 = scmp.eq.s32.totalorder %s26, 0
      %p173 = por %p171, %p172
      %p174 = scmp.ne.s32.totalorder %s160, %s161
      %p175 = scmp.eq.s32.totalorder %s27, 7
      %p176 = por %p174, %p175
      %p178 = scmp.ne.s32.totalorder %s161, %s177
      %p179 = scmp.eq.s32.totalorder %s27, 0
      %p180 = por %p178, %p179
      %s181 = ssub.s32 %s28, %s40
      %p182 = scmp.eq.s32.totalorder %s181, 0
      %s184 = sadd.s32 %s183, 1
      %s185 = scalar_select %p182, %s183, %s184
      %p188 = pneg %p182
      %p189 = scmp.eq.s32.totalorder %s21, 7
      %p190 = por %p188, %p189
      %p191 = scmp.ne.s32.totalorder %s183, %s186
      %p192 = scmp.eq.s32.totalorder %s21, 0
      %p193 = por %p191, %p192
      %p194 = scmp.ne.s32.totalorder %s183, %s186
      %p195 = scmp.eq.s32.totalorder %s26, 7
      %p196 = por %p194, %p195
      %p197 = scmp.ne.s32.totalorder %s186, %s187
      %p198 = scmp.eq.s32.totalorder %s26, 0
      %p199 = por %p197, %p198
      %p200 = scmp.ne.s32.totalorder %s186, %s187
      %p201 = scmp.eq.s32.totalorder %s27, 7
      %p202 = por %p200, %p201
      %p204 = scmp.ne.s32.totalorder %s187, %s203
      %p205 = scmp.eq.s32.totalorder %s27, 0
      %p206 = por %p204, %p205
      %p207 = scmp.le.s32.totalorder 1, %s21
      %p208 = scmp.lt.s32.totalorder %s21, 9
      %p209 = pnand %p207, %p208
      %p210 = pneg %p209
      // Predicated region
      $region9: #{tpu_custom_call.1} parent=5 // pred_check
        _
      $region10: #{tpu_custom_call.1} parent=5 // pred_check_branch
        %212 = sbr.rel (%p209) target = $region12
      $region11: #{tpu_custom_call.1} parent=5 // pred_region
        %s213 = ssub.s32 %s21, 1
        // Predicated region
        $region13: #{tpu_custom_call.1} parent=11 // pred_check
          %p214 = pneg %p82
        $region14: #{tpu_custom_call.1} parent=11 // pred_check_branch
          %216 = sbr.rel (%p214) target = $region16
        $region15: #{tpu_custom_call.1} parent=11 // pred_region
          %s218 = ssub.s32 3072, 3072
          %219 = vsyncadd [#allocation6], %s218
          %s220 = sshll.u32 [#allocation5], 4
          %s221 = int_to_ptr.vmem [resolvable:$true] %s220
          %226 = dma.hbm_to_vmem [thread:$0]  %s1, 3072, %s221, [#allocation6], 192, 192, 12
        $region16: #{tpu_custom_call.1} parent=11 // pred_fallthru
          _
        // Predicated region
        $region17: #{tpu_custom_call.1} parent=11 // pred_check
          %p227 = pneg %p103
        $region18: #{tpu_custom_call.1} parent=11 // pred_check_branch
          %229 = sbr.rel (%p227) target = $region20
        $region19: #{tpu_custom_call.1} parent=11 // pred_region
          %s231 = ssub.s32 3072, 3072
          %232 = vsyncadd [#allocation6], %s231
          %s233 = sshll.u32 [#allocation7], 4
          %s234 = int_to_ptr.vmem [resolvable:$true] %s233
          %239 = dma.hbm_to_vmem [thread:$0]  %s2, 3072, %s234, [#allocation6], 192, 192, 12
        $region20: #{tpu_custom_call.1} parent=11 // pred_fallthru
          _
        // Predicated region
        $region21: #{tpu_custom_call.1} parent=11 // pred_check
          %p240 = pneg %p124
        $region22: #{tpu_custom_call.1} parent=11 // pred_check_branch
          %242 = sbr.rel (%p240) target = $region24
        $region23: #{tpu_custom_call.1} parent=11 // pred_region
          _
        $region24: #{tpu_custom_call.1} parent=11 // pred_fallthru
          _
        // Predicated region
        $region25: #{tpu_custom_call.1} parent=11 // pred_check
          %p243 = pneg %p145
        $region26: #{tpu_custom_call.1} parent=11 // pred_check_branch
          %245 = sbr.rel (%p243) target = $region28
        $region27: #{tpu_custom_call.1} parent=11 // pred_region
          _
        $region28: #{tpu_custom_call.1} parent=11 // pred_fallthru
          _
      $region12: #{tpu_custom_call.1} parent=5 // pred_fallthru
        _
      %p246 = scmp.lt.s32.totalorder %s21, 8
      // Predicated region
      $region29: #{tpu_custom_call.1} parent=5 // pred_check
        %p247 = pneg %p246
      $region30: #{tpu_custom_call.1} parent=5 // pred_check_branch
        %249 = sbr.rel (%p247) target = $region32
      $region31: #{tpu_custom_call.1} parent=5 // pred_region
        // Predicated region
        $region33: #{tpu_custom_call.1} parent=31 // pred_check
          %p250 = pneg %p55
        $region34: #{tpu_custom_call.1} parent=31 // pred_check_branch
          %252 = sbr.rel (%p250) target = $region36
        $region35: #{tpu_custom_call.1} parent=31 // pred_region
          %s253 = sand.u32 %s45, 1
          %s254 = scalar_lea.sflag [#allocation3], %s253
          %s255 = sand.u32 %s45, 1
          %s256 = smul.addr %s255, 4
          %s257 = scalar_lea.vmem [#allocation2], %s256
          %s259 = ssub.s32 64, 64
          %260 = vsyncadd %s254, %s259
          %s261 = sadd.s32 %s28, %s29
          %s262 = smul.addr %s261, 64
          %s263 = scalar_lea.hbm %s0, %s262
          %s265 = sshll.u32 %s257, 4
          %s266 = int_to_ptr.vmem [resolvable:$true] %s265
          %268 = dma.hbm_to_vmem [thread:$0]  %s263, 64, %s266, %s254
        $region36: #{tpu_custom_call.1} parent=31 // pred_fallthru
          _
      $region32: #{tpu_custom_call.1} parent=5 // pred_fallthru
        _
      %p269 = scmp.le.s32.totalorder 1, %s21
      %p270 = scmp.lt.s32.totalorder %s21, 9
      %p271 = pnand %p269, %p270
      %p272 = pneg %p271
      // Predicated region
      $region37: #{tpu_custom_call.1} parent=5 // pred_check
        _
      $region38: #{tpu_custom_call.1} parent=5 // pred_check_branch
        %274 = sbr.rel (%p271) target = $region40
      $region39: #{tpu_custom_call.1} parent=5 // pred_region
        %s275 = ssub.s32 %s21, 1
        %s276 = sand.u32 %s48, 1
        %s277 = scalar_lea.sflag [#allocation3], %s276
        %s278 = sand.u32 %s48, 1
        %s279 = smul.addr %s278, 4
        %s280 = scalar_lea.vmem [#allocation2], %s279
        // Predicated region
        $region41: #{tpu_custom_call.1} parent=39 // pred_check
          %p281 = pneg %p61
        $region42: #{tpu_custom_call.1} parent=39 // pred_check_branch
          %283 = sbr.rel (%p281) target = $region44
        $region43: #{tpu_custom_call.1} parent=39 // pred_region
          %284 = dma.done %s277, 64
        $region44: #{tpu_custom_call.1} parent=39 // pred_fallthru
          _
        // Predicated region
        $region45: #{tpu_custom_call.1} parent=39 // pred_check
          %p285 = pneg %p82
        $region46: #{tpu_custom_call.1} parent=39 // pred_check_branch
          %287 = sbr.rel (%p285) target = $region48
        $region47: #{tpu_custom_call.1} parent=39 // pred_region
          %288 = dma.done [#allocation6], 3072
        $region48: #{tpu_custom_call.1} parent=39 // pred_fallthru
          _
        // Predicated region
        $region49: #{tpu_custom_call.1} parent=39 // pred_check
          %p289 = pneg %p103
        $region50: #{tpu_custom_call.1} parent=39 // pred_check_branch
          %291 = sbr.rel (%p289) target = $region52
        $region51: #{tpu_custom_call.1} parent=39 // pred_region
          %292 = dma.done [#allocation6], 3072
        $region52: #{tpu_custom_call.1} parent=39 // pred_fallthru
          _
        %s293 = sand.u32 %s48, 1
        %s294 = scalar_lea.sflag [#allocation3], %s293
        %s295 = sand.u32 %s48, 1
        %s296 = smul.addr %s295, 4
        %s297 = scalar_lea.vmem [#allocation2], %s296
        %p298 = pneg %p61
        %p299 = pneg %p58
        %p300 = pneg %p82
        %p301 = pneg %p79
        %p302 = pneg %p103
        %p303 = pneg %p100
        %p304 = pneg %p124
        %p305 = pneg %p121
        %p306 = pneg %p145
        %p307 = pneg %p142
        %p308 = pneg %p173
        %p309 = pneg %p170
        %s310 = sand.u32 %s160, 1
        %s311 = scalar_lea.sflag [#allocation4], %s310
        %s312 = sand.u32 %s160, 1
        %s313 = smul.addr %s312, 8
        %s314 = scalar_lea.vmem [#allocation8], %s313
        %p315 = pneg %p199
        %p316 = pneg %p196
        %p318 = scmp.eq.s32.totalorder %s31, 0
        // Predicated region
        $region53: #{tpu_custom_call.1} parent=39 // pred_check
          %p319 = pneg %p318
        $region54: #{tpu_custom_call.1} parent=39 // pred_check_branch
          %321 = sbr.rel (%p319) target = $region56
        $region55: #{tpu_custom_call.1} parent=39 // pred_region
          %322 = vst [vmem:[#allocation9] sm:$0xff] 0.0
        $region56: #{tpu_custom_call.1} parent=39 // pred_fallthru
          _
        %v323 = vld [vmem:[#allocation9] sm:$0xff]
        %v324 = vld [vmem:[%s280] sm:$0xf]
        %v325 = vld [vmem:[#allocation5] sm:$0xff]
        %v326 = vld [vmem:[#allocation5 + $0x8] sm:$0xf]
        %v327 = vld [vmem:[#allocation5 + $0xc] sm:$0xff]
        %v328 = vld [vmem:[#allocation5 + $0x14] sm:$0xf]
        %v329 = vld [vmem:[#allocation5 + $0x18] sm:$0xff]
        %v330 = vld [vmem:[#allocation5 + $0x20] sm:$0xf]
        %v331 = vld [vmem:[#allocation5 + $0x24] sm:$0xff]
        %v332 = vld [vmem:[#allocation5 + $0x2c] sm:$0xf]
        %v333 = vld [vmem:[#allocation5 + $0x30] sm:$0xff]
        %v334 = vld [vmem:[#allocation5 + $0x38] sm:$0xf]
        %v335 = vld [vmem:[#allocation5 + $0x3c] sm:$0xff]
        %v336 = vld [vmem:[#allocation5 + $0x44] sm:$0xf]
        %v337 = vld [vmem:[#allocation5 + $0x48] sm:$0xff]
        %v338 = vld [vmem:[#allocation5 + $0x50] sm:$0xf]
        %v339 = vld [vmem:[#allocation5 + $0x54] sm:$0xff]
        %v340 = vld [vmem:[#allocation5 + $0x5c] sm:$0xf]
        %v341 = vld [vmem:[#allocation5 + $0x60] sm:$0xff]
        %v342 = vld [vmem:[#allocation5 + $0x68] sm:$0xf]
        %v343 = vld [vmem:[#allocation5 + $0x6c] sm:$0xff]
        %v344 = vld [vmem:[#allocation5 + $0x74] sm:$0xf]
        %v345 = vld [vmem:[#allocation5 + $0x78] sm:$0xff]
        %v346 = vld [vmem:[#allocation5 + $0x80] sm:$0xf]
        %v347 = vld [vmem:[#allocation5 + $0x84] sm:$0xff]
        %v348 = vld [vmem:[#allocation5 + $0x8c] sm:$0xf]
        %v349 = vld [vmem:[#allocation5 + $0x90] sm:$0xff]
        %v350 = vld [vmem:[#allocation5 + $0x98] sm:$0xf]
        %v351 = vld [vmem:[#allocation5 + $0x9c] sm:$0xff]
        %v352 = vld [vmem:[#allocation5 + $0xa4] sm:$0xf]
        %v353 = vld [vmem:[#allocation5 + $0xa8] sm:$0xff]
        %v354 = vld [vmem:[#allocation5 + $0xb0] sm:$0xf]
        %v355 = vld [vmem:[#allocation5 + $0xb4] sm:$0xff]
        %v356 = vld [vmem:[#allocation5 + $0xbc] sm:$0xf]
        %v357 = vld [vmem:[%s3] sm:$0x7]
        %v359 = vlaneseq
        %v360 = vshrl.u32 %v359, 7
        %v361 = vsub.s32 0, %v360
        %v362 = vrot.slane %v357, %v361
        %v363 = vlaneseq
        %v364 = vshrl.u32 %v363, 7
        %v365 = vsub.s32 1, %v364
        %v366 = vrot.slane %v357, %v365
        %v367 = vlaneseq
        %v368 = vshrl.u32 %v367, 7
        %v369 = vsub.s32 2, %v368
        %v370 = vrot.slane %v357, %v369
        %v406 = vunpack.c.l.b16 %v325
        %v407 = vunpack.c.h.b16 %v325
        %v408 = vunpack.c.l.b16 %v326
        %v409 = vunpack.c.l.b16 %v327
        %v410 = vunpack.c.h.b16 %v327
        %v411 = vunpack.c.l.b16 %v328
        %v412 = vunpack.c.l.b16 %v329
        %v413 = vunpack.c.h.b16 %v329
        %v414 = vunpack.c.l.b16 %v330
        %v415 = vunpack.c.l.b16 %v331
        %v416 = vunpack.c.h.b16 %v331
        %v417 = vunpack.c.l.b16 %v332
        %v418 = vunpack.c.l.b16 %v333
        %v419 = vunpack.c.h.b16 %v333
        %v420 = vunpack.c.l.b16 %v334
        %v421 = vunpack.c.l.b16 %v335
        %v422 = vunpack.c.h.b16 %v335
        %v423 = vunpack.c.l.b16 %v336
        %v424 = vunpack.c.l.b16 %v337
        %v425 = vunpack.c.h.b16 %v337
        %v426 = vunpack.c.l.b16 %v338
        %v427 = vunpack.c.l.b16 %v339
        %v428 = vunpack.c.h.b16 %v339
        %v429 = vunpack.c.l.b16 %v340
        %v430 = vunpack.c.l.b16 %v341
        %v431 = vunpack.c.h.b16 %v341
        %v432 = vunpack.c.l.b16 %v342
        %v433 = vunpack.c.l.b16 %v343
        %v434 = vunpack.c.h.b16 %v343
        %v435 = vunpack.c.l.b16 %v344
        %v436 = vunpack.c.l.b16 %v345
        %v437 = vunpack.c.h.b16 %v345
        %v438 = vunpack.c.l.b16 %v346
        %v439 = vunpack.c.l.b16 %v347
        %v440 = vunpack.c.h.b16 %v347
        %v441 = vunpack.c.l.b16 %v348
        %v442 = vunpack.c.l.b16 %v349
        %v443 = vunpack.c.h.b16 %v349
        %v444 = vunpack.c.l.b16 %v350
        %v445 = vunpack.c.l.b16 %v351
        %v446 = vunpack.c.h.b16 %v351
        %v447 = vunpack.c.l.b16 %v352
        %v448 = vunpack.c.l.b16 %v353
        %v449 = vunpack.c.h.b16 %v353
        %v450 = vunpack.c.l.b16 %v354
        %v451 = vunpack.c.l.b16 %v355
        %v452 = vunpack.c.h.b16 %v355
        %v453 = vunpack.c.l.b16 %v356
        %v454 = vpack.c.b16 %v409, %v406
        %v455 = vpack.c.b16 %v410, %v407
        %v456 = vpack.c.b16 %v411, %v408
        %v457 = vpack.c.b16 %v415, %v412
        %v458 = vpack.c.b16 %v416, %v413
        %v459 = vpack.c.b16 %v417, %v414
        %v460 = vpack.c.b16 %v421, %v418
        %v461 = vpack.c.b16 %v422, %v419
        %v462 = vpack.c.b16 %v423, %v420
        %v463 = vpack.c.b16 %v427, %v424
        %v464 = vpack.c.b16 %v428, %v425
        %v465 = vpack.c.b16 %v429, %v426
        %v466 = vpack.c.b16 %v433, %v430
        %v467 = vpack.c.b16 %v434, %v431
        %v468 = vpack.c.b16 %v435, %v432
        %v469 = vpack.c.b16 %v439, %v436
        %v470 = vpack.c.b16 %v440, %v437
        %v471 = vpack.c.b16 %v441, %v438
        %v472 = vpack.c.b16 %v445, %v442
        %v473 = vpack.c.b16 %v446, %v443
        %v474 = vpack.c.b16 %v447, %v444
        %v475 = vpack.c.b16 %v451, %v448
        %v476 = vpack.c.b16 %v452, %v449
        %v477 = vpack.c.b16 %v453, %v450
        %502 = vmatprep.subr.bf16.mxu0 %v476
        %503 = vmatpush1.bf16.msra.mxu0 %v475
        %504 = vmatprep.subr.bf16.mxu0 %v473
        %505 = vmatpush1.bf16.msra.mxu0 %v472
        %506 = vmatprep.subr.bf16.mxu0 %v470
        %507 = vmatpush1.bf16.msra.mxu0 %v469
        %508 = vmatprep.subr.bf16.mxu0 %v467
        %509 = vmatpush1.bf16.msra.mxu0 %v466
        %510 = vmatprep.subr.bf16.mxu0 %v464
        %511 = vmatpush1.bf16.msra.mxu0 %v463
        %512 = vmatprep.subr.bf16.mxu0 %v461
        %513 = vmatpush1.bf16.msra.mxu0 %v460
        %514 = vmatprep.subr.bf16.mxu0 %v458
        %515 = vmatpush1.bf16.msra.mxu0 %v457
        %516 = vmatprep.subr.bf16.mxu0 %v455
        %517 = vmatpush1.bf16.msra.mxu0 %v454
        %518 = vmatprep.subr.bf16.mxu0 0
        %519 = vmatpush2.bf16.msra.mxu0 0
        %520 = vmatprep.subr.bf16.mxu0 0
        %521 = vmatpush2.bf16.msra.mxu0 0
        %522 = vmatprep.subr.bf16.mxu0 0
        %523 = vmatpush2.bf16.msra.mxu0 0
        %524 = vmatprep.subr.bf16.mxu0 0
        %525 = vmatpush2.bf16.msra.mxu0 0
        %526 = vmatprep.subr.bf16.mxu0 0
        %527 = vmatpush2.bf16.msra.mxu0 0
        %528 = vmatprep.subr.bf16.mxu0 0
        %529 = vmatpush2.bf16.msra.mxu0 0
        %530 = vmatprep.subr.bf16.mxu0 0
        %531 = vmatpush2.bf16.msra.mxu0 0
        %532 = vmatprep.subr.bf16.mxu0 0
        %533 = vmatpush2.bf16.msra.mxu0 0
        %534 = vmatprep.mubr.bf16.mxu0 0
        %535 = vmatmul.mubr.bf16.gmra.mxu0 %v324
        %v536 = vpop.f32.mrf.mxu0
        %v537 = vadd.f32 %v362, %v536
        %v538 = vpop.f32.mrf.mxu0
        %v539 = vadd.f32 %v366, %v538
        %v540 = vpop.f32.mrf.mxu0
        %v541 = vpop.f32.mrf.mxu0
        %542 = vdwg.mxu0
        %543 = vmatprep.subr.bf16.mxu0 0
        %544 = vmatpush1.bf16.msra.mxu0 %v477
        %545 = vmatprep.subr.bf16.mxu0 0
        %546 = vmatpush1.bf16.msra.mxu0 %v474
        %547 = vmatprep.subr.bf16.mxu0 0
        %548 = vmatpush1.bf16.msra.mxu0 %v471
        %549 = vmatprep.subr.bf16.mxu0 0
        %550 = vmatpush1.bf16.msra.mxu0 %v468
        %551 = vmatprep.subr.bf16.mxu0 0
        %552 = vmatpush1.bf16.msra.mxu0 %v465
        %553 = vmatprep.subr.bf16.mxu0 0
        %554 = vmatpush1.bf16.msra.mxu0 %v462
        %555 = vmatprep.subr.bf16.mxu0 0
        %556 = vmatpush1.bf16.msra.mxu0 %v459
        %557 = vmatprep.subr.bf16.mxu0 0
        %558 = vmatpush1.bf16.msra.mxu0 %v456
        %559 = vmatprep.subr.bf16.mxu0 0
        %560 = vmatpush2.bf16.msra.mxu0 0
        %561 = vmatprep.subr.bf16.mxu0 0
        %562 = vmatpush2.bf16.msra.mxu0 0
        %563 = vmatprep.subr.bf16.mxu0 0
        %564 = vmatpush2.bf16.msra.mxu0 0
        %565 = vmatprep.subr.bf16.mxu0 0
        %566 = vmatpush2.bf16.msra.mxu0 0
        %567 = vmatprep.subr.bf16.mxu0 0
        %568 = vmatpush2.bf16.msra.mxu0 0
        %569 = vmatprep.subr.bf16.mxu0 0
        %570 = vmatpush2.bf16.msra.mxu0 0
        %571 = vmatprep.subr.bf16.mxu0 0
        %572 = vmatpush2.bf16.msra.mxu0 0
        %573 = vmatprep.subr.bf16.mxu0 0
        %574 = vmatpush2.bf16.msra.mxu0 0
        %575 = vmatprep.mubr.bf16.mxu0 0
        %576 = vmatmul.mubr.bf16.gmra.mxu0 %v324
        %v577 = vpop.f32.mrf.mxu0
        %v578 = vadd.f32 %v370, %v577
        %v579 = vpop.f32.mrf.mxu0
        %v580 = vpop.f32.mrf.mxu0
        %v581 = vpop.f32.mrf.mxu0
        %582 = vdwg.mxu0
        %v583 = vpack.c.bf16 %v323, %v323
        %v584 = vld [vmem:[#allocation7] sm:$0xff]
        %v585 = vld [vmem:[#allocation7 + $0x8] sm:$0xf]
        %v586 = vld [vmem:[#allocation7 + $0xc] sm:$0xff]
        %v587 = vld [vmem:[#allocation7 + $0x14] sm:$0xf]
        %v588 = vld [vmem:[#allocation7 + $0x18] sm:$0xff]
        %v589 = vld [vmem:[#allocation7 + $0x20] sm:$0xf]
        %v590 = vld [vmem:[#allocation7 + $0x24] sm:$0xff]
        %v591 = vld [vmem:[#allocation7 + $0x2c] sm:$0xf]
        %v592 = vld [vmem:[#allocation7 + $0x30] sm:$0xff]
        %v593 = vld [vmem:[#allocation7 + $0x38] sm:$0xf]
        %v594 = vld [vmem:[#allocation7 + $0x3c] sm:$0xff]
        %v595 = vld [vmem:[#allocation7 + $0x44] sm:$0xf]
        %v596 = vld [vmem:[#allocation7 + $0x48] sm:$0xff]
        %v597 = vld [vmem:[#allocation7 + $0x50] sm:$0xf]
        %v598 = vld [vmem:[#allocation7 + $0x54] sm:$0xff]
        %v599 = vld [vmem:[#allocation7 + $0x5c] sm:$0xf]
        %v600 = vld [vmem:[#allocation7 + $0x60] sm:$0xff]
        %v601 = vld [vmem:[#allocation7 + $0x68] sm:$0xf]
        %v602 = vld [vmem:[#allocation7 + $0x6c] sm:$0xff]
        %v603 = vld [vmem:[#allocation7 + $0x74] sm:$0xf]
        %v604 = vld [vmem:[#allocation7 + $0x78] sm:$0xff]
        %v605 = vld [vmem:[#allocation7 + $0x80] sm:$0xf]
        %v606 = vld [vmem:[#allocation7 + $0x84] sm:$0xff]
        %v607 = vld [vmem:[#allocation7 + $0x8c] sm:$0xf]
        %v608 = vld [vmem:[#allocation7 + $0x90] sm:$0xff]
        %v609 = vld [vmem:[#allocation7 + $0x98] sm:$0xf]
        %v610 = vld [vmem:[#allocation7 + $0x9c] sm:$0xff]
        %v611 = vld [vmem:[#allocation7 + $0xa4] sm:$0xf]
        %v612 = vld [vmem:[#allocation7 + $0xa8] sm:$0xff]
        %v613 = vld [vmem:[#allocation7 + $0xb0] sm:$0xf]
        %v614 = vld [vmem:[#allocation7 + $0xb4] sm:$0xff]
        %v615 = vld [vmem:[#allocation7 + $0xbc] sm:$0xf]
        %v616 = vld [vmem:[%s4] sm:$0x7]
        %v618 = vlaneseq
        %v619 = vshrl.u32 %v618, 7
        %v620 = vsub.s32 0, %v619
        %v621 = vrot.slane %v616, %v620
        %v622 = vlaneseq
        %v623 = vshrl.u32 %v622, 7
        %v624 = vsub.s32 1, %v623
        %v625 = vrot.slane %v616, %v624
        %v626 = vlaneseq
        %v627 = vshrl.u32 %v626, 7
        %v628 = vsub.s32 2, %v627
        %v629 = vrot.slane %v616, %v628
        %v665 = vunpack.c.l.b16 %v584
        %v666 = vunpack.c.h.b16 %v584
        %v667 = vunpack.c.l.b16 %v585
        %v668 = vunpack.c.l.b16 %v586
        %v669 = vunpack.c.h.b16 %v586
        %v670 = vunpack.c.l.b16 %v587
        %v671 = vunpack.c.l.b16 %v588
        %v672 = vunpack.c.h.b16 %v588
        %v673 = vunpack.c.l.b16 %v589
        %v674 = vunpack.c.l.b16 %v590
        %v675 = vunpack.c.h.b16 %v590
        %v676 = vunpack.c.l.b16 %v591
        %v677 = vunpack.c.l.b16 %v592
        %v678 = vunpack.c.h.b16 %v592
        %v679 = vunpack.c.l.b16 %v593
        %v680 = vunpack.c.l.b16 %v594
        %v681 = vunpack.c.h.b16 %v594
        %v682 = vunpack.c.l.b16 %v595
        %v683 = vunpack.c.l.b16 %v596
        %v684 = vunpack.c.h.b16 %v596
        %v685 = vunpack.c.l.b16 %v597
        %v686 = vunpack.c.l.b16 %v598
        %v687 = vunpack.c.h.b16 %v598
        %v688 = vunpack.c.l.b16 %v599
        %v689 = vunpack.c.l.b16 %v600
        %v690 = vunpack.c.h.b16 %v600
        %v691 = vunpack.c.l.b16 %v601
        %v692 = vunpack.c.l.b16 %v602
        %v693 = vunpack.c.h.b16 %v602
        %v694 = vunpack.c.l.b16 %v603
        %v695 = vunpack.c.l.b16 %v604
        %v696 = vunpack.c.h.b16 %v604
        %v697 = vunpack.c.l.b16 %v605
        %v698 = vunpack.c.l.b16 %v606
        %v699 = vunpack.c.h.b16 %v606
        %v700 = vunpack.c.l.b16 %v607
        %v701 = vunpack.c.l.b16 %v608
        %v702 = vunpack.c.h.b16 %v608
        %v703 = vunpack.c.l.b16 %v609
        %v704 = vunpack.c.l.b16 %v610
        %v705 = vunpack.c.h.b16 %v610
        %v706 = vunpack.c.l.b16 %v611
        %v707 = vunpack.c.l.b16 %v612
        %v708 = vunpack.c.h.b16 %v612
        %v709 = vunpack.c.l.b16 %v613
        %v710 = vunpack.c.l.b16 %v614
        %v711 = vunpack.c.h.b16 %v614
        %v712 = vunpack.c.l.b16 %v615
        %v713 = vpack.c.b16 %v668, %v665
        %v714 = vpack.c.b16 %v669, %v666
        %v715 = vpack.c.b16 %v670, %v667
        %v716 = vpack.c.b16 %v674, %v671
        %v717 = vpack.c.b16 %v675, %v672
        %v718 = vpack.c.b16 %v676, %v673
        %v719 = vpack.c.b16 %v680, %v677
        %v720 = vpack.c.b16 %v681, %v678
        %v721 = vpack.c.b16 %v682, %v679
        %v722 = vpack.c.b16 %v686, %v683
        %v723 = vpack.c.b16 %v687, %v684
        %v724 = vpack.c.b16 %v688, %v685
        %v725 = vpack.c.b16 %v692, %v689
        %v726 = vpack.c.b16 %v693, %v690
        %v727 = vpack.c.b16 %v694, %v691
        %v728 = vpack.c.b16 %v698, %v695
        %v729 = vpack.c.b16 %v699, %v696
        %v730 = vpack.c.b16 %v700, %v697
        %v731 = vpack.c.b16 %v704, %v701
        %v732 = vpack.c.b16 %v705, %v702
        %v733 = vpack.c.b16 %v706, %v703
        %v734 = vpack.c.b16 %v710, %v707
        %v735 = vpack.c.b16 %v711, %v708
        %v736 = vpack.c.b16 %v712, %v709
        %761 = vmatprep.subr.bf16.mxu0 %v735
        %762 = vmatpush1.bf16.msra.mxu0 %v734
        %763 = vmatprep.subr.bf16.mxu0 %v732
        %764 = vmatpush1.bf16.msra.mxu0 %v731
        %765 = vmatprep.subr.bf16.mxu0 %v729
        %766 = vmatpush1.bf16.msra.mxu0 %v728
        %767 = vmatprep.subr.bf16.mxu0 %v726
        %768 = vmatpush1.bf16.msra.mxu0 %v725
        %769 = vmatprep.subr.bf16.mxu0 %v723
        %770 = vmatpush1.bf16.msra.mxu0 %v722
        %771 = vmatprep.subr.bf16.mxu0 %v720
        %772 = vmatpush1.bf16.msra.mxu0 %v719
        %773 = vmatprep.subr.bf16.mxu0 %v717
        %774 = vmatpush1.bf16.msra.mxu0 %v716
        %775 = vmatprep.subr.bf16.mxu0 %v714
        %776 = vmatpush1.bf16.msra.mxu0 %v713
        %777 = vmatprep.subr.bf16.mxu0 0
        %778 = vmatpush2.bf16.msra.mxu0 0
        %779 = vmatprep.subr.bf16.mxu0 0
        %780 = vmatpush2.bf16.msra.mxu0 0
        %781 = vmatprep.subr.bf16.mxu0 0
        %782 = vmatpush2.bf16.msra.mxu0 0
        %783 = vmatprep.subr.bf16.mxu0 0
        %784 = vmatpush2.bf16.msra.mxu0 0
        %785 = vmatprep.subr.bf16.mxu0 0
        %786 = vmatpush2.bf16.msra.mxu0 0
        %787 = vmatprep.subr.bf16.mxu0 0
        %788 = vmatpush2.bf16.msra.mxu0 0
        %789 = vmatprep.subr.bf16.mxu0 0
        %790 = vmatpush2.bf16.msra.mxu0 0
        %791 = vmatprep.subr.bf16.mxu0 0
        %792 = vmatpush2.bf16.msra.mxu0 0
        %793 = vmatprep.mubr.bf16.mxu0 0
        %794 = vmatmul.mubr.bf16.gmra.mxu0 %v583
        %v795 = vpop.f32.mrf.mxu0
        %v796 = vadd.f32 %v621, %v795
        %v797 = vpop.f32.mrf.mxu0
        %v798 = vadd.f32 %v625, %v797
        %v799 = vpop.f32.mrf.mxu0
        %v800 = vpop.f32.mrf.mxu0
        %801 = vdwg.mxu0
        %802 = vmatprep.subr.bf16.mxu0 0
        %803 = vmatpush1.bf16.msra.mxu0 %v736
        %804 = vmatprep.subr.bf16.mxu0 0
        %805 = vmatpush1.bf16.msra.mxu0 %v733
        %806 = vmatprep.subr.bf16.mxu0 0
        %807 = vmatpush1.bf16.msra.mxu0 %v730
        %808 = vmatprep.subr.bf16.mxu0 0
        %809 = vmatpush1.bf16.msra.mxu0 %v727
        %810 = vmatprep.subr.bf16.mxu0 0
        %811 = vmatpush1.bf16.msra.mxu0 %v724
        %812 = vmatprep.subr.bf16.mxu0 0
        %813 = vmatpush1.bf16.msra.mxu0 %v721
        %814 = vmatprep.subr.bf16.mxu0 0
        %815 = vmatpush1.bf16.msra.mxu0 %v718
        %816 = vmatprep.subr.bf16.mxu0 0
        %817 = vmatpush1.bf16.msra.mxu0 %v715
        %818 = vmatprep.subr.bf16.mxu0 0
        %819 = vmatpush2.bf16.msra.mxu0 0
        %820 = vmatprep.subr.bf16.mxu0 0
        %821 = vmatpush2.bf16.msra.mxu0 0
        %822 = vmatprep.subr.bf16.mxu0 0
        %823 = vmatpush2.bf16.msra.mxu0 0
        %824 = vmatprep.subr.bf16.mxu0 0
        %825 = vmatpush2.bf16.msra.mxu0 0
        %826 = vmatprep.subr.bf16.mxu0 0
        %827 = vmatpush2.bf16.msra.mxu0 0
        %828 = vmatprep.subr.bf16.mxu0 0
        %829 = vmatpush2.bf16.msra.mxu0 0
        %830 = vmatprep.subr.bf16.mxu0 0
        %831 = vmatpush2.bf16.msra.mxu0 0
        %832 = vmatprep.subr.bf16.mxu0 0
        %833 = vmatpush2.bf16.msra.mxu0 0
        %834 = vmatprep.mubr.bf16.mxu0 0
        %835 = vmatmul.mubr.bf16.gmra.mxu0 %v583
        %v836 = vpop.f32.mrf.mxu0
        %v837 = vadd.f32 %v629, %v836
        %v838 = vpop.f32.mrf.mxu0
        %v839 = vpop.f32.mrf.mxu0
        %v840 = vpop.f32.mrf.mxu0
        %841 = vdwg.mxu0
        %v842 = vadd.f32 %v537, %v796
        %v843 = vxor.u32 %v842, 2147483648
        %v844 = vmul.f32 %v843, 1.442695
        %v845 = vpow.pop %v844
        %v846 = vadd.f32 %v845, 1.0
        %v847 = vrcp.pop %v846
        %v848 = vmul.f32 1.0, %v847
        %v849 = vadd.f32 %v539, %v798
        %v850 = vxor.u32 %v849, 2147483648
        %v851 = vmul.f32 %v850, 1.442695
        %v852 = vpow.pop %v851
        %v853 = vadd.f32 %v852, 1.0
        %v854 = vrcp.pop %v853
        %v855 = vmul.f32 1.0, %v854
        %v856 = vmul.f32 %v848, %v837
        %v857 = vadd.f32 %v578, %v856
        %v858 = vtanh.pop %v857
        %v859 = vsub.f32 1.0, %v855
        %v860 = vmul.f32 %v859, %v858
        %v861 = vmul.f32 %v855, %v323
        %v862 = vadd.f32 %v860, %v861
        %863 = vst [vmem:[#allocation9] sm:$0xff] %v862
        %864 = vst [vmem:[%s314] sm:$0xff] %v862
        %s865 = sand.u32 %s160, 1
        %s866 = scalar_lea.sflag [#allocation4], %s865
        %s867 = sand.u32 %s160, 1
        %s868 = smul.addr %s867, 8
        %s869 = scalar_lea.vmem [#allocation8], %s868
        // Predicated region
        $region57: #{tpu_custom_call.1} parent=39 // pred_check
          %p870 = pneg %p170
        $region58: #{tpu_custom_call.1} parent=39 // pred_check_branch
          %872 = sbr.rel (%p870) target = $region60
        $region59: #{tpu_custom_call.1} parent=39 // pred_region
          %s874 = ssub.s32 128, 128
          %875 = vsyncadd %s866, %s874
          %s876 = sadd.s32 %s30, %s31
          %s877 = smul.addr %s876, 128
          %s878 = scalar_lea.hbm %s5, %s877
          %s880 = sshll.u32 %s869, 4
          %s881 = int_to_ptr.vmem [resolvable:$true] %s880
          %883 = dma.vmem_to_hbm [thread:$0]  %s881, 128, %s878, %s866
        $region60: #{tpu_custom_call.1} parent=39 // pred_fallthru
          _
        // Predicated region
        $region61: #{tpu_custom_call.1} parent=39 // pred_check
          %p884 = pneg %p196
        $region62: #{tpu_custom_call.1} parent=39 // pred_check_branch
          %886 = sbr.rel (%p884) target = $region64
        $region63: #{tpu_custom_call.1} parent=39 // pred_region
          %s888 = ssub.s32 128, 128
          %889 = vsyncadd [#allocation10], %s888
          %s890 = smul.addr %s30, 128
          %s891 = scalar_lea.hbm %s6, %s890
          %s893 = sshll.u32 [#allocation9], 4
          %s894 = int_to_ptr.vmem [resolvable:$true] %s893
          %896 = dma.vmem_to_hbm [thread:$0]  %s894, 128, %s891, [#allocation10]
        $region64: #{tpu_custom_call.1} parent=39 // pred_fallthru
          _
        // Predicated region
        $region65: #{tpu_custom_call.1} parent=39 // pred_check
          %p897 = pneg %p196
        $region66: #{tpu_custom_call.1} parent=39 // pred_check_branch
          %899 = sbr.rel (%p897) target = $region68
        $region67: #{tpu_custom_call.1} parent=39 // pred_region
          %900 = dma.done [#allocation10], 128
        $region68: #{tpu_custom_call.1} parent=39 // pred_fallthru
          _
      $region40: #{tpu_custom_call.1} parent=5 // pred_fallthru
        _
      %p901 = scmp.le.s32.totalorder 2, %s21
      // Predicated region
      $region69: #{tpu_custom_call.1} parent=5 // pred_check
        %p902 = pneg %p901
      $region70: #{tpu_custom_call.1} parent=5 // pred_check_branch
        %904 = sbr.rel (%p902) target = $region72
      $region71: #{tpu_custom_call.1} parent=5 // pred_region
        %s905 = ssub.s32 %s21, 2
        // Predicated region
        $region73: #{tpu_custom_call.1} parent=71 // pred_check
          %p906 = pneg %p176
        $region74: #{tpu_custom_call.1} parent=71 // pred_check_branch
          %908 = sbr.rel (%p906) target = $region76
        $region75: #{tpu_custom_call.1} parent=71 // pred_region
          %s909 = sand.u32 %s161, 1
          %s910 = scalar_lea.sflag [#allocation4], %s909
          %s911 = sand.u32 %s161, 1
          %s912 = smul.addr %s911, 8
          %s913 = scalar_lea.vmem [#allocation8], %s912
          %914 = dma.done %s910, 128
        $region76: #{tpu_custom_call.1} parent=71 // pred_fallthru
          _
      $region72: #{tpu_custom_call.1} parent=5 // pred_fallthru
        _
    $region6: #{tpu_custom_call.1} parent=1 // loop_footer
      %s25 = sadd.s32 1, %s21
    $region7: #{tpu_custom_call.1} parent=1 // loop_footer_branch
      %20 = sbr.rel target = $region3
    $region8: #{tpu_custom_call.1} parent=1 // loop_exit
      _
    %915 = vsyncpa [#allocation3], 1
    %s916 = scalar_lea.sflag [#allocation3], 1
    %917 = vsyncpa %s916, 1
    %918 = vsyncpa [#allocation6], 1
    %919 = vsyncpa [#allocation4], 1
    %s920 = scalar_lea.sflag [#allocation4], 1
    %921 = vsyncpa %s920, 1
    %922 = vsyncpa [#allocation10], 1

// kernel: tpu_custom_call.1
$region0: #{tpu_custom_call.1}
  #allocation0 [shape = 'u32[]', space=smem, size = 0x4, offset = 0x4, fixed_abs, tag = 'smem constant byte address 0x4 - core index']
  #allocation1 [shape = 'u32[144,128]{1,0:T(1,128)}', space=vmem, size = 0x12000, scoped, tag = 'internal scratch']
  %s0 = inlined_call_operand.hbm [shape: bf16[8,8,128], index: 0, kind: input, shape index: {}]
  %s1 = inlined_call_operand.hbm [shape: bf16[128,384], index: 1, kind: input, shape index: {}]
  %s2 = inlined_call_operand.hbm [shape: bf16[128,384], index: 2, kind: input, shape index: {}]
  %s3 = inlined_call_operand.vmem [shape: f32[1,384], index: 3, kind: input, shape index: {}]
  %s4 = inlined_call_operand.vmem [shape: f32[1,384], index: 4, kind: input, shape index: {}]
  %s5 = inlined_call_operand.hbm [shape: f32[8,8,128], index: 5, kind: output, shape index: {0}]
  %s6 = inlined_call_operand.hbm [shape: f32[8,128], index: 6, kind: output, shape index: {1}]
  %7 = xla_tuple %s5, %s6
  %s8 = sld [smem:[#allocation0]]
  $region77: #{tpu_custom_call.1} parent=0
    _
  %s10 = ssub.s32 1, %s8
  %s11 = scalar_select 0, %s10, %s8
  $region1: #{tpu_custom_call.1} parent=0
    #allocation2 [shape = 'u8[4096]{0}', space=vmem, size = 0x1000, scoped, tag = 'input window, operand 0']
    #allocation3 [shape = 's32[2]{0}', space=sflag, size = 0x8, scoped, tag = 'scoped memory for tpu_custom_call.1']
    #allocation4 [shape = 's32[2]{0}', space=sflag, size = 0x8, scoped, tag = 'scoped memory for tpu_custom_call.1']
    #allocation5 [shape = 'u8[98304]{0}', space=vmem, size = 0x18000, scoped, tag = 'input window, operand 1, single buffered']
    #allocation6 [shape = 's32[1]{0}', space=sflag, size = 0x4, scoped, tag = 'scoped memory for tpu_custom_call.1']
    #allocation7 [shape = 'u8[98304]{0}', space=vmem, size = 0x18000, scoped, tag = 'input window, operand 2, single buffered']
    #allocation8 [shape = 'u8[8192]{0}', space=vmem, size = 0x2000, scoped, tag = 'output window, operand 0']
    #allocation9 [shape = 'u8[4096]{0}', space=vmem, size = 0x1000, scoped, tag = 'output window, operand 1, single buffered']
    #allocation10 [shape = 's32[1]{0}', space=sflag, size = 0x4, scoped, tag = 'scoped memory for tpu_custom_call.1']
    %12 = vsyncpa [#allocation3], 0
    %s13 = scalar_lea.sflag [#allocation3], 1
    %14 = vsyncpa %s13, 0
    %15 = vsyncpa [#allocation6], 0
    %16 = vsyncpa [#allocation4], 0
    %s17 = scalar_lea.sflag [#allocation4], 1
    %18 = vsyncpa %s17, 0
    %19 = vsyncpa [#allocation10], 0
    loop: start=0, step=1, limit=10
    $region2: #{tpu_custom_call.1} parent=1 // loop_pre_header
      _
    $region3: #{tpu_custom_call.1} parent=1 // loop_header
      %s21 = sphi 0, %s25
      %p22 = scmp.ge.s32.totalorder %s21, 10
      %s28 = sphi 0, %s40
      %s29 = sphi 0, %s36
      %s30 = sphi 0, %s28
      %s31 = sphi 0, %s29
      %s32 = sphi 0, %s30
      %s33 = sphi 0, %s31
      %s45 = sphi 0, %s47
      %s48 = sphi 0, %s45
      %s49 = sphi 0, %s48
      %s65 = sphi 0, %s49
      %s69 = sphi 0, %s69
      %s71 = sphi 0, %s69
      %s72 = sphi 0, %s71
      %s86 = sphi 0, %s72
      %s90 = sphi 0, %s90
      %s92 = sphi 0, %s90
      %s93 = sphi 0, %s92
      %s107 = sphi 0, %s93
      %s111 = sphi 0, %s111
      %s113 = sphi 0, %s111
      %s114 = sphi 0, %s113
      %s128 = sphi 0, %s114
      %s132 = sphi 0, %s132
      %s134 = sphi 0, %s132
      %s135 = sphi 0, %s134
      %s149 = sphi 0, %s135
      %s157 = sphi 0, %s159
      %s160 = sphi 0, %s157
      %s161 = sphi 0, %s160
      %s177 = sphi 0, %s161
      %s183 = sphi 0, %s185
      %s186 = sphi 0, %s183
      %s187 = sphi 0, %s186
      %s203 = sphi 0, %s187
    $region4: #{tpu_custom_call.1} parent=1 // loop_header_branch
      %24 = sbr.rel (%p22) target = $region8
    $region5: #{tpu_custom_call.1} parent=1 // loop_body
      %s26 = ssub.s32 %s21, 1
      %s27 = ssub.s32 %s21, 2
      %s34 = sadd.s32 1, %s29
      %p35 = scmp.ge.s32.totalorder %s34, 8
      %s36 = scalar_select %p35, 0, %s34
      %s37 = sadd.s32 1, %s28
      %s38 = scalar_select %p35, %s37, %s28
      %p39 = scmp.ge.s32.totalorder %s38, 1
      %s40 = scalar_select %p39, 0, %s38
      %s41 = ssub.s32 %s29, %s36
      %s42 = ssub.s32 %s28, %s40
      %s43 = sor.u32 %s41, %s42
      %p44 = scmp.eq.s32.totalorder %s43, 0
      %s46 = sadd.s32 %s45, 1
      %s47 = scalar_select %p44, %s45, %s46
      %p50 = pneg %p44
      %p51 = scmp.eq.s32.totalorder %s21, 7
      %p52 = por %p50, %p51
      %p53 = scmp.ne.s32.totalorder %s45, %s48
      %p54 = scmp.eq.s32.totalorder %s21, 0
      %p55 = por %p53, %p54
      %p56 = scmp.ne.s32.totalorder %s45, %s48
      %p57 = scmp.eq.s32.totalorder %s26, 7
      %p58 = por %p56, %p57
      %p59 = scmp.ne.s32.totalorder %s48, %s49
      %p60 = scmp.eq.s32.totalorder %s26, 0
      %p61 = por %p59, %p60
      %p62 = scmp.ne.s32.totalorder %s48, %s49
      %p63 = scmp.eq.s32.totalorder %s27, 7
      %p64 = por %p62, %p63
      %p66 = scmp.ne.s32.totalorder %s49, %s65
      %p67 = scmp.eq.s32.totalorder %s27, 0
      %p68 = por %p66, %p67
      %s70 = sadd.s32 %s69, 1
      %p73 = scmp.eq.s32.totalorder %s21, 7
      %p74 = scmp.ne.s32.totalorder %s69, %s71
      %p75 = scmp.eq.s32.totalorder %s21, 0
      %p76 = por %p74, %p75
      %p77 = scmp.ne.s32.totalorder %s69, %s71
      %p78 = scmp.eq.s32.totalorder %s26, 7
      %p79 = por %p77, %p78
      %p80 = scmp.ne.s32.totalorder %s71, %s72
      %p81 = scmp.eq.s32.totalorder %s26, 0
      %p82 = por %p80, %p81
      %p83 = scmp.ne.s32.totalorder %s71, %s72
      %p84 = scmp.eq.s32.totalorder %s27, 7
      %p85 = por %p83, %p84
      %p87 = scmp.ne.s32.totalorder %s72, %s86
      %p88 = scmp.eq.s32.totalorder %s27, 0
      %p89 = por %p87, %p88
      %s91 = sadd.s32 %s90, 1
      %p94 = scmp.eq.s32.totalorder %s21, 7
      %p95 = scmp.ne.s32.totalorder %s90, %s92
      %p96 = scmp.eq.s32.totalorder %s21, 0
      %p97 = por %p95, %p96
      %p98 = scmp.ne.s32.totalorder %s90, %s92
      %p99 = scmp.eq.s32.totalorder %s26, 7
      %p100 = por %p98, %p99
      %p101 = scmp.ne.s32.totalorder %s92, %s93
      %p102 = scmp.eq.s32.totalorder %s26, 0
      %p103 = por %p101, %p102
      %p104 = scmp.ne.s32.totalorder %s92, %s93
      %p105 = scmp.eq.s32.totalorder %s27, 7
      %p106 = por %p104, %p105
      %p108 = scmp.ne.s32.totalorder %s93, %s107
      %p109 = scmp.eq.s32.totalorder %s27, 0
      %p110 = por %p108, %p109
      %s112 = sadd.s32 %s111, 1
      %p115 = scmp.eq.s32.totalorder %s21, 7
      %p116 = scmp.ne.s32.totalorder %s111, %s113
      %p117 = scmp.eq.s32.totalorder %s21, 0
      %p118 = por %p116, %p117
      %p119 = scmp.ne.s32.totalorder %s111, %s113
      %p120 = scmp.eq.s32.totalorder %s26, 7
      %p121 = por %p119, %p120
      %p122 = scmp.ne.s32.totalorder %s113, %s114
      %p123 = scmp.eq.s32.totalorder %s26, 0
      %p124 = por %p122, %p123
      %p125 = scmp.ne.s32.totalorder %s113, %s114
      %p126 = scmp.eq.s32.totalorder %s27, 7
      %p127 = por %p125, %p126
      %p129 = scmp.ne.s32.totalorder %s114, %s128
      %p130 = scmp.eq.s32.totalorder %s27, 0
      %p131 = por %p129, %p130
      %s133 = sadd.s32 %s132, 1
      %p136 = scmp.eq.s32.totalorder %s21, 7
      %p137 = scmp.ne.s32.totalorder %s132, %s134
      %p138 = scmp.eq.s32.totalorder %s21, 0
      %p139 = por %p137, %p138
      %p140 = scmp.ne.s32.totalorder %s132, %s134
      %p141 = scmp.eq.s32.totalorder %s26, 7
      %p142 = por %p140, %p141
      %p143 = scmp.ne.s32.totalorder %s134, %s135
      %p144 = scmp.eq.s32.totalorder %s26, 0
      %p145 = por %p143, %p144
      %p146 = scmp.ne.s32.totalorder %s134, %s135
      %p147 = scmp.eq.s32.totalorder %s27, 7
      %p148 = por %p146, %p147
      %p150 = scmp.ne.s32.totalorder %s135, %s149
      %p151 = scmp.eq.s32.totalorder %s27, 0
      %p152 = por %p150, %p151
      %s153 = ssub.s32 %s29, %s36
      %s154 = ssub.s32 %s28, %s40
      %s155 = sor.u32 %s153, %s154
      %p156 = scmp.eq.s32.totalorder %s155, 0
      %s158 = sadd.s32 %s157, 1
      %s159 = scalar_select %p156, %s157, %s158
      %p162 = pneg %p156
      %p163 = scmp.eq.s32.totalorder %s21, 7
      %p164 = por %p162, %p163
      %p165 = scmp.ne.s32.totalorder %s157, %s160
      %p166 = scmp.eq.s32.totalorder %s21, 0
      %p167 = por %p165, %p166
      %p168 = scmp.ne.s32.totalorder %s157, %s160
      %p169 = scmp.eq.s32.totalorder %s26, 7
      %p170 = por %p168, %p169
      %p171 = scmp.ne.s32.totalorder %s160, %s161
      %p172 = scmp.eq.s32.totalorder %s26, 0
      %p173 = por %p171, %p172
      %p174 = scmp.ne.s32.totalorder %s160, %s161
      %p175 = scmp.eq.s32.totalorder %s27, 7
      %p176 = por %p174, %p175
      %p178 = scmp.ne.s32.totalorder %s161, %s177
      %p179 = scmp.eq.s32.totalorder %s27, 0
      %p180 = por %p178, %p179
      %s181 = ssub.s32 %s28, %s40
      %p182 = scmp.eq.s32.totalorder %s181, 0
      %s184 = sadd.s32 %s183, 1
      %s185 = scalar_select %p182, %s183, %s184
      %p188 = pneg %p182
      %p189 = scmp.eq.s32.totalorder %s21, 7
      %p190 = por %p188, %p189
      %p191 = scmp.ne.s32.totalorder %s183, %s186
      %p192 = scmp.eq.s32.totalorder %s21, 0
      %p193 = por %p191, %p192
      %p194 = scmp.ne.s32.totalorder %s183, %s186
      %p195 = scmp.eq.s32.totalorder %s26, 7
      %p196 = por %p194, %p195
      %p197 = scmp.ne.s32.totalorder %s186, %s187
      %p198 = scmp.eq.s32.totalorder %s26, 0
      %p199 = por %p197, %p198
      %p200 = scmp.ne.s32.totalorder %s186, %s187
      %p201 = scmp.eq.s32.totalorder %s27, 7
      %p202 = por %p200, %p201
      %p204 = scmp.ne.s32.totalorder %s187, %s203
      %p205 = scmp.eq.s32.totalorder %s27, 0
      %p206 = por %p204, %p205
      %p207 = scmp.le.s32.totalorder 1, %s21
      %p208 = scmp.lt.s32.totalorder %s21, 9
      %p209 = pnand %p207, %p208
      %p210 = pneg %p209
      // Predicated region
      $region9: #{tpu_custom_call.1} parent=5 // pred_check
        _
      $region10: #{tpu_custom_call.1} parent=5 // pred_check_branch
        %212 = sbr.rel (%p209) target = $region12
      $region11: #{tpu_custom_call.1} parent=5 // pred_region
        %s213 = ssub.s32 %s21, 1
        // Predicated region
        $region13: #{tpu_custom_call.1} parent=11 // pred_check
          %p214 = pneg %p82
        $region14: #{tpu_custom_call.1} parent=11 // pred_check_branch
          %216 = sbr.rel (%p214) target = $region16
        $region15: #{tpu_custom_call.1} parent=11 // pred_region
          %s218 = ssub.s32 3072, 3072
          %219 = vsyncadd [#allocation6], %s218
          %s220 = sshll.u32 [#allocation5], 4
          %s221 = int_to_ptr.vmem [resolvable:$true] %s220
          %226 = dma.hbm_to_vmem [thread:$0]  %s1, 3072, %s221, [#allocation6], 192, 192, 12
        $region16: #{tpu_custom_call.1} parent=11 // pred_fallthru
          _
        // Predicated region
        $region17: #{tpu_custom_call.1} parent=11 // pred_check
          %p227 = pneg %p103
        $region18: #{tpu_custom_call.1} parent=11 // pred_check_branch
          %229 = sbr.rel (%p227) target = $region20
        $region19: #{tpu_custom_call.1} parent=11 // pred_region
          %s231 = ssub.s32 3072, 3072
          %232 = vsyncadd [#allocation6], %s231
          %s233 = sshll.u32 [#allocation7], 4
          %s234 = int_to_ptr.vmem [resolvable:$true] %s233
          %239 = dma.hbm_to_vmem [thread:$0]  %s2, 3072, %s234, [#allocation6], 192, 192, 12
        $region20: #{tpu_custom_call.1} parent=11 // pred_fallthru
          _
        // Predicated region
        $region21: #{tpu_custom_call.1} parent=11 // pred_check
          %p240 = pneg %p124
        $region22: #{tpu_custom_call.1} parent=11 // pred_check_branch
          %242 = sbr.rel (%p240) target = $region24
        $region23: #{tpu_custom_call.1} parent=11 // pred_region
          _
        $region24: #{tpu_custom_call.1} parent=11 // pred_fallthru
          _
        // Predicated region
        $region25: #{tpu_custom_call.1} parent=11 // pred_check
          %p243 = pneg %p145
        $region26: #{tpu_custom_call.1} parent=11 // pred_check_branch
          %245 = sbr.rel (%p243) target = $region28
        $region27: #{tpu_custom_call.1} parent=11 // pred_region
          _
        $region28: #{tpu_custom_call.1} parent=11 // pred_fallthru
          _
      $region12: #{tpu_custom_call.1} parent=5 // pred_fallthru
        _
      %p246 = scmp.lt.s32.totalorder %s21, 8
      // Predicated region
      $region29: #{tpu_custom_call.1} parent=5 // pred_check
        %p247 = pneg %p246
      $region30: #{tpu_custom_call.1} parent=5 // pred_check_branch
        %249 = sbr.rel (%p247) target = $region32
      $region31: #{tpu_custom_call.1} parent=5 // pred_region
        // Predicated region
        $region33: #{tpu_custom_call.1} parent=31 // pred_check
          %p250 = pneg %p55
        $region34: #{tpu_custom_call.1} parent=31 // pred_check_branch
          %252 = sbr.rel (%p250) target = $region36
        $region35: #{tpu_custom_call.1} parent=31 // pred_region
          %s253 = sand.u32 %s45, 1
          %s254 = scalar_lea.sflag [#allocation3], %s253
          %s255 = sand.u32 %s45, 1
          %s256 = smul.addr %s255, 4
          %s257 = scalar_lea.vmem [#allocation2], %s256
          %s259 = ssub.s32 64, 64
          %260 = vsyncadd %s254, %s259
          %s261 = sadd.s32 %s28, %s29
          %s262 = smul.addr %s261, 64
          %s263 = scalar_lea.hbm %s0, %s262
          %s265 = sshll.u32 %s257, 4
          %s266 = int_to_ptr.vmem [resolvable:$true] %s265
          %268 = dma.hbm_to_vmem [thread:$0]  %s263, 64, %s266, %s254
        $region36: #{tpu_custom_call.1} parent=31 // pred_fallthru
          _
      $region32: #{tpu_custom_call.1} parent=5 // pred_fallthru
        _
      %p269 = scmp.le.s32.totalorder 1, %s21
      %p270 = scmp.lt.s32.totalorder %s21, 9
      %p271 = pnand %p269, %p270
      %p272 = pneg %p271
      // Predicated region
      $region37: #{tpu_custom_call.1} parent=5 // pred_check
        _
      $region38: #{tpu_custom_call.1} parent=5 // pred_check_branch
        %274 = sbr.rel (%p271) target = $region40
      $region39: #{tpu_custom_call.1} parent=5 // pred_region
        %s275 = ssub.s32 %s21, 1
        %s276 = sand.u32 %s48, 1
        %s277 = scalar_lea.sflag [#allocation3], %s276
        %s278 = sand.u32 %s48, 1
        %s279 = smul.addr %s278, 4
        %s280 = scalar_lea.vmem [#allocation2], %s279
        // Predicated region
        $region41: #{tpu_custom_call.1} parent=39 // pred_check
          %p281 = pneg %p61
        $region42: #{tpu_custom_call.1} parent=39 // pred_check_branch
          %283 = sbr.rel (%p281) target = $region44
        $region43: #{tpu_custom_call.1} parent=39 // pred_region
          %284 = dma.done %s277, 64
        $region44: #{tpu_custom_call.1} parent=39 // pred_fallthru
          _
        // Predicated region
        $region45: #{tpu_custom_call.1} parent=39 // pred_check
          %p285 = pneg %p82
        $region46: #{tpu_custom_call.1} parent=39 // pred_check_branch
          %287 = sbr.rel (%p285) target = $region48
        $region47: #{tpu_custom_call.1} parent=39 // pred_region
          %288 = dma.done [#allocation6], 3072
        $region48: #{tpu_custom_call.1} parent=39 // pred_fallthru
          _
        // Predicated region
        $region49: #{tpu_custom_call.1} parent=39 // pred_check
          %p289 = pneg %p103
        $region50: #{tpu_custom_call.1} parent=39 // pred_check_branch
          %291 = sbr.rel (%p289) target = $region52
        $region51: #{tpu_custom_call.1} parent=39 // pred_region
          %292 = dma.done [#allocation6], 3072
        $region52: #{tpu_custom_call.1} parent=39 // pred_fallthru
          _
        %s293 = sand.u32 %s48, 1
        %s294 = scalar_lea.sflag [#allocation3], %s293
        %s295 = sand.u32 %s48, 1
        %s296 = smul.addr %s295, 4
        %s297 = scalar_lea.vmem [#allocation2], %s296
        %p298 = pneg %p61
        %p299 = pneg %p58
        %p300 = pneg %p82
        %p301 = pneg %p79
        %p302 = pneg %p103
        %p303 = pneg %p100
        %p304 = pneg %p124
        %p305 = pneg %p121
        %p306 = pneg %p145
        %p307 = pneg %p142
        %p308 = pneg %p173
        %p309 = pneg %p170
        %s310 = sand.u32 %s160, 1
        %s311 = scalar_lea.sflag [#allocation4], %s310
        %s312 = sand.u32 %s160, 1
        %s313 = smul.addr %s312, 8
        %s314 = scalar_lea.vmem [#allocation8], %s313
        %p315 = pneg %p199
        %p316 = pneg %p196
        %p318 = scmp.eq.s32.totalorder %s31, 0
        // Predicated region
        $region53: #{tpu_custom_call.1} parent=39 // pred_check
          %p319 = pneg %p318
        $region54: #{tpu_custom_call.1} parent=39 // pred_check_branch
          %321 = sbr.rel (%p319) target = $region56
        $region55: #{tpu_custom_call.1} parent=39 // pred_region
          %322 = vst [vmem:[#allocation9] sm:$0xff] 0.0
        $region56: #{tpu_custom_call.1} parent=39 // pred_fallthru
          _
        %v323 = vld [vmem:[#allocation9] sm:$0xff]
        %v324 = vld [vmem:[%s280] sm:$0xf]
        %v325 = vld [vmem:[#allocation5] sm:$0xff]
        %v326 = vld [vmem:[#allocation5 + $0x8] sm:$0xf]
        %v327 = vld [vmem:[#allocation5 + $0xc] sm:$0xff]
        %v328 = vld [vmem:[#allocation5 + $0x14] sm:$0xf]
        %v329 = vld [vmem:[#allocation5 + $0x18] sm:$0xff]
        %v330 = vld [vmem:[#allocation5 + $0x20] sm:$0xf]
        %v331 = vld [vmem:[#allocation5 + $0x24] sm:$0xff]
        %v332 = vld [vmem:[#allocation5 + $0x2c] sm:$0xf]
        %v333 = vld [vmem:[#allocation5 + $0x30] sm:$0xff]
        %v334 = vld [vmem:[#allocation5 + $0x38] sm:$0xf]
        %v335 = vld [vmem:[#allocation5 + $0x3c] sm:$0xff]
        %v336 = vld [vmem:[#allocation5 + $0x44] sm:$0xf]
        %v337 = vld [vmem:[#allocation5 + $0x48] sm:$0xff]
        %v338 = vld [vmem:[#allocation5 + $0x50] sm:$0xf]
        %v339 = vld [vmem:[#allocation5 + $0x54] sm:$0xff]
        %v340 = vld [vmem:[#allocation5 + $0x5c] sm:$0xf]
        %v341 = vld [vmem:[#allocation5 + $0x60] sm:$0xff]
        %v342 = vld [vmem:[#allocation5 + $0x68] sm:$0xf]
        %v343 = vld [vmem:[#allocation5 + $0x6c] sm:$0xff]
        %v344 = vld [vmem:[#allocation5 + $0x74] sm:$0xf]
        %v345 = vld [vmem:[#allocation5 + $0x78] sm:$0xff]
        %v346 = vld [vmem:[#allocation5 + $0x80] sm:$0xf]
        %v347 = vld [vmem:[#allocation5 + $0x84] sm:$0xff]
        %v348 = vld [vmem:[#allocation5 + $0x8c] sm:$0xf]
        %v349 = vld [vmem:[#allocation5 + $0x90] sm:$0xff]
        %v350 = vld [vmem:[#allocation5 + $0x98] sm:$0xf]
        %v351 = vld [vmem:[#allocation5 + $0x9c] sm:$0xff]
        %v352 = vld [vmem:[#allocation5 + $0xa4] sm:$0xf]
        %v353 = vld [vmem:[#allocation5 + $0xa8] sm:$0xff]
        %v354 = vld [vmem:[#allocation5 + $0xb0] sm:$0xf]
        %v355 = vld [vmem:[#allocation5 + $0xb4] sm:$0xff]
        %v356 = vld [vmem:[#allocation5 + $0xbc] sm:$0xf]
        %v357 = vld [vmem:[%s3] sm:$0x7]
        %v359 = vlaneseq
        %v360 = vshrl.u32 %v359, 7
        %v361 = vsub.s32 0, %v360
        %v362 = vrot.slane %v357, %v361
        %v363 = vlaneseq
        %v364 = vshrl.u32 %v363, 7
        %v365 = vsub.s32 1, %v364
        %v366 = vrot.slane %v357, %v365
        %v367 = vlaneseq
        %v368 = vshrl.u32 %v367, 7
        %v369 = vsub.s32 2, %v368
        %v370 = vrot.slane %v357, %v369
        %v406 = vunpack.c.l.b16 %v325
        %v407 = vunpack.c.h.b16 %v325
        %v408 = vunpack.c.l.b16 %v326
        %v409 = vunpack.c.l.b16 %v327
        %v410 = vunpack.c.h.b16 %v327
        %v411 = vunpack.c.l.b16 %v328
        %v412 = vunpack.c.l.b16 %v329
        %v413 = vunpack.c.h.b16 %v329
        %v414 = vunpack.c.l.b16 %v330
        %v415 = vunpack.c.l.b16 %v331
        %v416 = vunpack.c.h.b16 %v331
        %v417 = vunpack.c.l.b16 %v332
        %v418 = vunpack.c.l.b16 %v333
        %v419 = vunpack.c.h.b16 %v333
        %v420 = vunpack.c.l.b16 %v334
        %v421 = vunpack.c.l.b16 %v335
        %v422 = vunpack.c.h.b16 %v335
        %v423 = vunpack.c.l.b16 %v336
        %v424 = vunpack.c.l.b16 %v337
        %v425 = vunpack.c.h.b16 %v337
        %v426 = vunpack.c.l.b16 %v338
        %v427 = vunpack.c.l.b16 %v339
        %v428 = vunpack.c.h.b16 %v339
        %v429 = vunpack.c.l.b16 %v340
        %v430 = vunpack.c.l.b16 %v341
        %v431 = vunpack.c.h.b16 %v341
        %v432 = vunpack.c.l.b16 %v342
        %v433 = vunpack.c.l.b16 %v343
        %v434 = vunpack.c.h.b16 %v343
        %v435 = vunpack.c.l.b16 %v344
        %v436 = vunpack.c.l.b16 %v345
        %v437 = vunpack.c.h.b16 %v345
        %v438 = vunpack.c.l.b16 %v346
        %v439 = vunpack.c.l.b16 %v347
        %v440 = vunpack.c.h.b16 %v347
        %v441 = vunpack.c.l.b16 %v348
        %v442 = vunpack.c.l.b16 %v349
        %v443 = vunpack.c.h.b16 %v349
        %v444 = vunpack.c.l.b16 %v350
        %v445 = vunpack.c.l.b16 %v351
        %v446 = vunpack.c.h.b16 %v351
        %v447 = vunpack.c.l.b16 %v352
        %v448 = vunpack.c.l.b16 %v353
        %v449 = vunpack.c.h.b16 %v353
        %v450 = vunpack.c.l.b16 %v354
        %v451 = vunpack.c.l.b16 %v355
        %v452 = vunpack.c.h.b16 %v355
        %v453 = vunpack.c.l.b16 %v356
        %v454 = vpack.c.b16 %v409, %v406
        %v455 = vpack.c.b16 %v410, %v407
        %v456 = vpack.c.b16 %v411, %v408
        %v457 = vpack.c.b16 %v415, %v412
        %v458 = vpack.c.b16 %v416, %v413
        %v459 = vpack.c.b16 %v417, %v414
        %v460 = vpack.c.b16 %v421, %v418
        %v461 = vpack.c.b16 %v422, %v419
        %v462 = vpack.c.b16 %v423, %v420
        %v463 = vpack.c.b16 %v427, %v424
        %v464 = vpack.c.b16 %v428, %v425
        %v465 = vpack.c.b16 %v429, %v426
        %v466 = vpack.c.b16 %v433, %v430
        %v467 = vpack.c.b16 %v434, %v431
        %v468 = vpack.c.b16 %v435, %v432
        %v469 = vpack.c.b16 %v439, %v436
        %v470 = vpack.c.b16 %v440, %v437
        %v471 = vpack.c.b16 %v441, %v438
        %v472 = vpack.c.b16 %v445, %v442
        %v473 = vpack.c.b16 %v446, %v443
        %v474 = vpack.c.b16 %v447, %v444
        %v475 = vpack.c.b16 %v451, %v448
        %v476 = vpack.c.b16 %v452, %v449
        %v477 = vpack.c.b16 %v453, %v450
        %502 = vmatprep.subr.bf16.mxu0 %v476
        %503 = vmatpush1.bf16.msra.mxu0 %v475
        %504 = vmatprep.subr.bf16.mxu0 %v473
        %505 = vmatpush1.bf16.msra.mxu0 %v472
        %506 = vmatprep.subr.bf16.mxu0 %v470
        %507 = vmatpush1.bf16.msra.mxu0 %v469
        %508 = vmatprep.subr.bf16.mxu0 %v467
        %509 = vmatpush1.bf16.msra.mxu0 %v466
        %510 = vmatprep.subr.bf16.mxu0 %v464
        %511 = vmatpush1.bf16.msra.mxu0 %v463
        %512 = vmatprep.subr.bf16.mxu0 %v461
        %513 = vmatpush1.bf16.msra.mxu0 %v460
        %514 = vmatprep.subr.bf16.mxu0 %v458
        %515 = vmatpush1.bf16.msra.mxu0 %v457
        %516 = vmatprep.subr.bf16.mxu0 %v455
        %517 = vmatpush1.bf16.msra.mxu0 %v454
        %518 = vmatprep.subr.bf16.mxu0 0
        %519 = vmatpush2.bf16.msra.mxu0 0
        %520 = vmatprep.subr.bf16.mxu0 0
        %521 = vmatpush2.bf16.msra.mxu0 0
        %522 = vmatprep.subr.bf16.mxu0 0
        %523 = vmatpush2.bf16.msra.mxu0 0
        %524 = vmatprep.subr.bf16.mxu0 0
        %525 = vmatpush2.bf16.msra.mxu0 0
        %526 = vmatprep.subr.bf16.mxu0 0
        %527 = vmatpush2.bf16.msra.mxu0 0
        %528 = vmatprep.subr.bf16.mxu0 0
        %529 = vmatpush2.bf16.msra.mxu0 0
        %530 = vmatprep.subr.bf16.mxu0 0
        %531 = vmatpush2.bf16.msra.mxu0 0
        %532 = vmatprep.subr.bf16.mxu0 0
        %533 = vmatpush2.bf16.msra.mxu0 0
        %534 = vmatprep.mubr.bf16.mxu0 0
        %535 = vmatmul.mubr.bf16.gmra.mxu0 %v324
        %v536 = vpop.f32.mrf.mxu0
        %v537 = vadd.f32 %v362, %v536
        %v538 = vpop.f32.mrf.mxu0
        %v539 = vadd.f32 %v366, %v538
        %v540 = vpop.f32.mrf.mxu0
        %v541 = vpop.f32.mrf.mxu0
        %542 = vdwg.mxu0
        %543 = vmatprep.subr.bf16.mxu0 0
        %544 = vmatpush1.bf16.msra.mxu0 %v477
        %545 = vmatprep.subr.bf16.mxu0 0
        %546 = vmatpush1.bf16.msra.mxu0 %v474
        %547 = vmatprep.subr.bf16.mxu0 0
        %548 = vmatpush1.bf16.msra.mxu0 %v471
        %549 = vmatprep.subr.bf16.mxu0 0
        %550 = vmatpush1.bf16.msra.mxu0 %v468
        %551 = vmatprep.subr.bf16.mxu0 0
        %552 = vmatpush1.bf16.msra.mxu0 %v465
        %553 = vmatprep.subr.bf16.mxu0 0
        %554 = vmatpush1.bf16.msra.mxu0 %v462
        %555 = vmatprep.subr.bf16.mxu0 0
        %556 = vmatpush1.bf16.msra.mxu0 %v459
        %557 = vmatprep.subr.bf16.mxu0 0
        %558 = vmatpush1.bf16.msra.mxu0 %v456
        %559 = vmatprep.subr.bf16.mxu0 0
        %560 = vmatpush2.bf16.msra.mxu0 0
        %561 = vmatprep.subr.bf16.mxu0 0
        %562 = vmatpush2.bf16.msra.mxu0 0
        %563 = vmatprep.subr.bf16.mxu0 0
        %564 = vmatpush2.bf16.msra.mxu0 0
        %565 = vmatprep.subr.bf16.mxu0 0
        %566 = vmatpush2.bf16.msra.mxu0 0
        %567 = vmatprep.subr.bf16.mxu0 0
        %568 = vmatpush2.bf16.msra.mxu0 0
        %569 = vmatprep.subr.bf16.mxu0 0
        %570 = vmatpush2.bf16.msra.mxu0 0
        %571 = vmatprep.subr.bf16.mxu0 0
        %572 = vmatpush2.bf16.msra.mxu0 0
        %573 = vmatprep.subr.bf16.mxu0 0
        %574 = vmatpush2.bf16.msra.mxu0 0
        %575 = vmatprep.mubr.bf16.mxu0 0
        %576 = vmatmul.mubr.bf16.gmra.mxu0 %v324
        %v577 = vpop.f32.mrf.mxu0
        %v578 = vadd.f32 %v370, %v577
        %v579 = vpop.f32.mrf.mxu0
        %v580 = vpop.f32.mrf.mxu0
        %v581 = vpop.f32.mrf.mxu0
        %582 = vdwg.mxu0
        %v583 = vpack.c.bf16 %v323, %v323
        %v584 = vld [vmem:[#allocation7] sm:$0xff]
        %v585 = vld [vmem:[#allocation7 + $0x8] sm:$0xf]
        %v586 = vld [vmem:[#allocation7 + $0xc] sm:$0xff]
        %v587 = vld [vmem:[#allocation7 + $0x14] sm:$0xf]
        %v588 = vld [vmem:[#allocation7 + $0x18] sm:$0xff]
        %v589 = vld [vmem:[#allocation7 + $0x20] sm:$0xf]
        %v590 = vld [vmem:[#allocation7 + $0x24] sm:$0xff]
        %v591 = vld [vmem:[#allocation7 + $0x2c] sm:$0xf]
        %v592 = vld [vmem:[#allocation7 + $0x30] sm:$0xff]
        %v593 = vld [vmem:[#allocation7 + $0x38] sm:$0xf]
        %v594 = vld [vmem:[#allocation7 + $0x3c] sm:$0xff]
        %v595 = vld [vmem:[#allocation7 + $0x44] sm:$0xf]
        %v596 = vld [vmem:[#allocation7 + $0x48] sm:$0xff]
        %v597 = vld [vmem:[#allocation7 + $0x50] sm:$0xf]
        %v598 = vld [vmem:[#allocation7 + $0x54] sm:$0xff]
        %v599 = vld [vmem:[#allocation7 + $0x5c] sm:$0xf]
        %v600 = vld [vmem:[#allocation7 + $0x60] sm:$0xff]
        %v601 = vld [vmem:[#allocation7 + $0x68] sm:$0xf]
        %v602 = vld [vmem:[#allocation7 + $0x6c] sm:$0xff]
        %v603 = vld [vmem:[#allocation7 + $0x74] sm:$0xf]
        %v604 = vld [vmem:[#allocation7 + $0x78] sm:$0xff]
        %v605 = vld [vmem:[#allocation7 + $0x80] sm:$0xf]
        %v606 = vld [vmem:[#allocation7 + $0x84] sm:$0xff]
        %v607 = vld [vmem:[#allocation7 + $0x8c] sm:$0xf]
        %v608 = vld [vmem:[#allocation7 + $0x90] sm:$0xff]
        %v609 = vld [vmem:[#allocation7 + $0x98] sm:$0xf]
        %v610 = vld [vmem:[#allocation7 + $0x9c] sm:$0xff]
        %v611 = vld [vmem:[#allocation7 + $0xa4] sm:$0xf]
        %v612 = vld [vmem:[#allocation7 + $0xa8] sm:$0xff]
        %v613 = vld [vmem:[#allocation7 + $0xb0] sm:$0xf]
        %v614 = vld [vmem:[#allocation7 + $0xb4] sm:$0xff]
        %v615 = vld [vmem:[#allocation7 + $0xbc] sm:$0xf]
        %v616 = vld [vmem:[%s4] sm:$0x7]
        %v618 = vlaneseq
        %v619 = vshrl.u32 %v618, 7
        %v620 = vsub.s32 0, %v619
        %v621 = vrot.slane %v616, %v620
        %v622 = vlaneseq
        %v623 = vshrl.u32 %v622, 7
        %v624 = vsub.s32 1, %v623
        %v625 = vrot.slane %v616, %v624
        %v626 = vlaneseq
        %v627 = vshrl.u32 %v626, 7
        %v628 = vsub.s32 2, %v627
        %v629 = vrot.slane %v616, %v628
        %v665 = vunpack.c.l.b16 %v584
        %v666 = vunpack.c.h.b16 %v584
        %v667 = vunpack.c.l.b16 %v585
        %v668 = vunpack.c.l.b16 %v586
        %v669 = vunpack.c.h.b16 %v586
        %v670 = vunpack.c.l.b16 %v587
        %v671 = vunpack.c.l.b16 %v588
        %v672 = vunpack.c.h.b16 %v588
        %v673 = vunpack.c.l.b16 %v589
        %v674 = vunpack.c.l.b16 %v590
        %v675 = vunpack.c.h.b16 %v590
        %v676 = vunpack.c.l.b16 %v591
        %v677 = vunpack.c.l.b16 %v592
        %v678 = vunpack.c.h.b16 %v592
        %v679 = vunpack.c.l.b16 %v593
        %v680 = vunpack.c.l.b16 %v594
        %v681 = vunpack.c.h.b16 %v594
        %v682 = vunpack.c.l.b16 %v595
        %v683 = vunpack.c.l.b16 %v596
        %v684 = vunpack.c.h.b16 %v596
        %v685 = vunpack.c.l.b16 %v597
        %v686 = vunpack.c.l.b16 %v598
        %v687 = vunpack.c.h.b16 %v598
        %v688 = vunpack.c.l.b16 %v599
        %v689 = vunpack.c.l.b16 %v600
        %v690 = vunpack.c.h.b16 %v600
        %v691 = vunpack.c.l.b16 %v601
        %v692 = vunpack.c.l.b16 %v602
        %v693 = vunpack.c.h.b16 %v602
        %v694 = vunpack.c.l.b16 %v603
        %v695 = vunpack.c.l.b16 %v604
        %v696 = vunpack.c.h.b16 %v604
        %v697 = vunpack.c.l.b16 %v605
        %v698 = vunpack.c.l.b16 %v606
        %v699 = vunpack.c.h.b16 %v606
        %v700 = vunpack.c.l.b16 %v607
        %v701 = vunpack.c.l.b16 %v608
        %v702 = vunpack.c.h.b16 %v608
        %v703 = vunpack.c.l.b16 %v609
        %v704 = vunpack.c.l.b16 %v610
        %v705 = vunpack.c.h.b16 %v610
        %v706 = vunpack.c.l.b16 %v611
        %v707 = vunpack.c.l.b16 %v612
        %v708 = vunpack.c.h.b16 %v612
        %v709 = vunpack.c.l.b16 %v613
        %v710 = vunpack.c.l.b16 %v614
        %v711 = vunpack.c.h.b16 %v614
        %v712 = vunpack.c.l.b16 %v615
        %v713 = vpack.c.b16 %v668, %v665
        %v714 = vpack.c.b16 %v669, %v666
        %v715 = vpack.c.b16 %v670, %v667
        %v716 = vpack.c.b16 %v674, %v671
        %v717 = vpack.c.b16 %v675, %v672
        %v718 = vpack.c.b16 %v676, %v673
        %v719 = vpack.c.b16 %v680, %v677
        %v720 = vpack.c.b16 %v681, %v678
        %v721 = vpack.c.b16 %v682, %v679
        %v722 = vpack.c.b16 %v686, %v683
        %v723 = vpack.c.b16 %v687, %v684
        %v724 = vpack.c.b16 %v688, %v685
        %v725 = vpack.c.b16 %v692, %v689
        %v726 = vpack.c.b16 %v693, %v690
        %v727 = vpack.c.b16 %v694, %v691
        %v728 = vpack.c.b16 %v698, %v695
        %v729 = vpack.c.b16 %v699, %v696
        %v730 = vpack.c.b16 %v700, %v697
        %v731 = vpack.c.b16 %v704, %v701
        %v732 = vpack.c.b16 %v705, %v702
        %v733 = vpack.c.b16 %v706, %v703
        %v734 = vpack.c.b16 %v710, %v707
        %v735 = vpack.c.b16 %v711, %v708
        %v736 = vpack.c.b16 %v712, %v709
        %761 = vmatprep.subr.bf16.mxu0 %v735
        %762 = vmatpush1.bf16.msra.mxu0 %v734
        %763 = vmatprep.subr.bf16.mxu0 %v732
        %764 = vmatpush1.bf16.msra.mxu0 %v731
        %765 = vmatprep.subr.bf16.mxu0 %v729
        %766 = vmatpush1.bf16.msra.mxu0 %v728
        %767 = vmatprep.subr.bf16.mxu0 %v726
        %768 = vmatpush1.bf16.msra.mxu0 %v725
        %769 = vmatprep.subr.bf16.mxu0 %v723
        %770 = vmatpush1.bf16.msra.mxu0 %v722
        %771 = vmatprep.subr.bf16.mxu0 %v720
        %772 = vmatpush1.bf16.msra.mxu0 %v719
        %773 = vmatprep.subr.bf16.mxu0 %v717
        %774 = vmatpush1.bf16.msra.mxu0 %v716
        %775 = vmatprep.subr.bf16.mxu0 %v714
        %776 = vmatpush1.bf16.msra.mxu0 %v713
        %777 = vmatprep.subr.bf16.mxu0 0
        %778 = vmatpush2.bf16.msra.mxu0 0
        %779 = vmatprep.subr.bf16.mxu0 0
        %780 = vmatpush2.bf16.msra.mxu0 0
        %781 = vmatprep.subr.bf16.mxu0 0
        %782 = vmatpush2.bf16.msra.mxu0 0
        %783 = vmatprep.subr.bf16.mxu0 0
        %784 = vmatpush2.bf16.msra.mxu0 0
        %785 = vmatprep.subr.bf16.mxu0 0
        %786 = vmatpush2.bf16.msra.mxu0 0
        %787 = vmatprep.subr.bf16.mxu0 0
        %788 = vmatpush2.bf16.msra.mxu0 0
        %789 = vmatprep.subr.bf16.mxu0 0
        %790 = vmatpush2.bf16.msra.mxu0 0
        %791 = vmatprep.subr.bf16.mxu0 0
        %792 = vmatpush2.bf16.msra.mxu0 0
        %793 = vmatprep.mubr.bf16.mxu0 0
        %794 = vmatmul.mubr.bf16.gmra.mxu0 %v583
        %v795 = vpop.f32.mrf.mxu0
        %v796 = vadd.f32 %v621, %v795
        %v797 = vpop.f32.mrf.mxu0
        %v798 = vadd.f32 %v625, %v797
        %v799 = vpop.f32.mrf.mxu0
        %v800 = vpop.f32.mrf.mxu0
        %801 = vdwg.mxu0
        %802 = vmatprep.subr.bf16.mxu0 0
        %803 = vmatpush1.bf16.msra.mxu0 %v736
        %804 = vmatprep.subr.bf16.mxu0 0
        %805 = vmatpush1.bf16.msra.mxu0 %v733
        %806 = vmatprep.subr.bf16.mxu0 0
        %807 = vmatpush1.bf16.msra.mxu0 %v730
        %808 = vmatprep.subr.bf16.mxu0 0
        %809 = vmatpush1.bf16.msra.mxu0 %v727
        %810 = vmatprep.subr.bf16.mxu0 0
        %811 = vmatpush1.bf16.msra.mxu0 %v724
        %812 = vmatprep.subr.bf16.mxu0 0
        %813 = vmatpush1.bf16.msra.mxu0 %v721
        %814 = vmatprep.subr.bf16.mxu0 0
        %815 = vmatpush1.bf16.msra.mxu0 %v718
        %816 = vmatprep.subr.bf16.mxu0 0
        %817 = vmatpush1.bf16.msra.mxu0 %v715
        %818 = vmatprep.subr.bf16.mxu0 0
        %819 = vmatpush2.bf16.msra.mxu0 0
        %820 = vmatprep.subr.bf16.mxu0 0
        %821 = vmatpush2.bf16.msra.mxu0 0
        %822 = vmatprep.subr.bf16.mxu0 0
        %823 = vmatpush2.bf16.msra.mxu0 0
        %824 = vmatprep.subr.bf16.mxu0 0
        %825 = vmatpush2.bf16.msra.mxu0 0
        %826 = vmatprep.subr.bf16.mxu0 0
        %827 = vmatpush2.bf16.msra.mxu0 0
        %828 = vmatprep.subr.bf16.mxu0 0
        %829 = vmatpush2.bf16.msra.mxu0 0
        %830 = vmatprep.subr.bf16.mxu0 0
        %831 = vmatpush2.bf16.msra.mxu0 0
        %832 = vmatprep.subr.bf16.mxu0 0
        %833 = vmatpush2.bf16.msra.mxu0 0
        %834 = vmatprep.mubr.bf16.mxu0 0
        %835 = vmatmul.mubr.bf16.gmra.mxu0 %v583
        %v836 = vpop.f32.mrf.mxu0
        %v837 = vadd.f32 %v629, %v836
        %v838 = vpop.f32.mrf.mxu0
        %v839 = vpop.f32.mrf.mxu0
        %v840 = vpop.f32.mrf.mxu0
        %841 = vdwg.mxu0
        %v842 = vadd.f32 %v537, %v796
        %v843 = vxor.u32 %v842, 2147483648
        %v844 = vmul.f32 %v843, 1.442695
        %v845 = vpow.pop %v844
        %v846 = vadd.f32 %v845, 1.0
        %v847 = vrcp.pop %v846
        %v848 = vmul.f32 1.0, %v847
        %v849 = vadd.f32 %v539, %v798
        %v850 = vxor.u32 %v849, 2147483648
        %v851 = vmul.f32 %v850, 1.442695
        %v852 = vpow.pop %v851
        %v853 = vadd.f32 %v852, 1.0
        %v854 = vrcp.pop %v853
        %v855 = vmul.f32 1.0, %v854
        %v856 = vmul.f32 %v848, %v837
        %v857 = vadd.f32 %v578, %v856
        %v858 = vtanh.pop %v857
        %v859 = vsub.f32 1.0, %v855
        %v860 = vmul.f32 %v859, %v858
        %v861 = vmul.f32 %v855, %v323
        %v862 = vadd.f32 %v860, %v861
        %863 = vst [vmem:[#allocation9] sm:$0xff] %v862
        %864 = vst [vmem:[%s314] sm:$0xff] %v862
        %s865 = sand.u32 %s160, 1
        %s866 = scalar_lea.sflag [#allocation4], %s865
        %s867 = sand.u32 %s160, 1
        %s868 = smul.addr %s867, 8
        %s869 = scalar_lea.vmem [#allocation8], %s868
        // Predicated region
        $region57: #{tpu_custom_call.1} parent=39 // pred_check
          %p870 = pneg %p170
        $region58: #{tpu_custom_call.1} parent=39 // pred_check_branch
          %872 = sbr.rel (%p870) target = $region60
        $region59: #{tpu_custom_call.1} parent=39 // pred_region
          %s874 = ssub.s32 128, 128
          %875 = vsyncadd %s866, %s874
          %s876 = sadd.s32 %s30, %s31
          %s877 = smul.addr %s876, 128
          %s878 = scalar_lea.hbm %s5, %s877
          %s880 = sshll.u32 %s869, 4
          %s881 = int_to_ptr.vmem [resolvable:$true] %s880
          %883 = dma.vmem_to_hbm [thread:$0]  %s881, 128, %s878, %s866
        $region60: #{tpu_custom_call.1} parent=39 // pred_fallthru
          _
        // Predicated region
        $region61: #{tpu_custom_call.1} parent=39 // pred_check
          %p884 = pneg %p196
        $region62: #{tpu_custom_call.1} parent=39 // pred_check_branch
          %886 = sbr.rel (%p884) target = $region64
        $region63: #{tpu_custom_call.1} parent=39 // pred_region
          %s888 = ssub.s32 128, 128
          %889 = vsyncadd [#allocation10], %s888
          %s890 = smul.addr %s30, 128
          %s891 = scalar_lea.hbm %s6, %s890
          %s893 = sshll.u32 [#allocation9], 4
          %s894 = int_to_ptr.vmem [resolvable:$true] %s893
          %896 = dma.vmem_to_hbm [thread:$0]  %s894, 128, %s891, [#allocation10]
        $region64: #{tpu_custom_call.1} parent=39 // pred_fallthru
          _
        // Predicated region
        $region65: #{tpu_custom_call.1} parent=39 // pred_check
          %p897 = pneg %p196
        $region66: #{tpu_custom_call.1} parent=39 // pred_check_branch
          %899 = sbr.rel (%p897) target = $region68
        $region67: #{tpu_custom_call.1} parent=39 // pred_region
          %900 = dma.done [#allocation10], 128
        $region68: #{tpu_custom_call.1} parent=39 // pred_fallthru
          _
      $region40: #{tpu_custom_call.1} parent=5 // pred_fallthru
        _
      %p901 = scmp.le.s32.totalorder 2, %s21
      // Predicated region
      $region69: #{tpu_custom_call.1} parent=5 // pred_check
        %p902 = pneg %p901
      $region70: #{tpu_custom_call.1} parent=5 // pred_check_branch
        %904 = sbr.rel (%p902) target = $region72
      $region71: #{tpu_custom_call.1} parent=5 // pred_region
        %s905 = ssub.s32 %s21, 2
        // Predicated region
        $region73: #{tpu_custom_call.1} parent=71 // pred_check
          %p906 = pneg %p176
        $region74: #{tpu_custom_call.1} parent=71 // pred_check_branch
          %908 = sbr.rel (%p906) target = $region76
        $region75: #{tpu_custom_call.1} parent=71 // pred_region
          %s909 = sand.u32 %s161, 1
          %s910 = scalar_lea.sflag [#allocation4], %s909
          %s911 = sand.u32 %s161, 1
          %s912 = smul.addr %s911, 8
          %s913 = scalar_lea.vmem [#allocation8], %s912
          %914 = dma.done %s910, 128
        $region76: #{tpu_custom_call.1} parent=71 // pred_fallthru
          _
      $region72: #{tpu_custom_call.1} parent=5 // pred_fallthru
        _
    $region6: #{tpu_custom_call.1} parent=1 // loop_footer
      %s25 = sadd.s32 1, %s21
    $region7: #{tpu_custom_call.1} parent=1 // loop_footer_branch
      %20 = sbr.rel target = $region3
    $region8: #{tpu_custom_call.1} parent=1 // loop_exit
      _
    %915 = vsyncpa [#allocation3], 1
    %s916 = scalar_lea.sflag [#allocation3], 1
    %917 = vsyncpa %s916, 1
    %918 = vsyncpa [#allocation6], 1
    %919 = vsyncpa [#allocation4], 1
    %s920 = scalar_lea.sflag [#allocation4], 1
    %921 = vsyncpa %s920, 1
    %922 = vsyncpa [#allocation10], 1

</llo_original>
